<compile_context>
chip_gen: v7x
topology: tpu7x:2x2x1
jax: 0.10.0
libtpu: 0.0.40
codegen_flags: <defaults>
</compile_context>

<pallas_src>
import jax
import jax.numpy as jnp
from jax.experimental import pallas as pl
from jax.experimental.pallas import tpu as pltpu

PACK = 64  # batch rows packed per kernel row; 64*10 = 640 = 5*128 lanes (lane-dense)


def _mlp_kernel(x_ref, w1_ref, b1_ref, w2_ref, b2_ref, o_ref):
    # Fused hot path: matmul1 + bias + ReLU + matmul2 + bias, all in VMEM.
    x = x_ref[...]                                            # (T, PACK*10)
    h = jnp.dot(x, w1_ref[...], preferred_element_type=jnp.float32) + b1_ref[...]
    h = jnp.maximum(h, 0.0)                                   # ReLU
    y = jnp.dot(h, w2_ref[...], preferred_element_type=jnp.float32) + b2_ref[...]
    o_ref[...] = y.astype(o_ref.dtype)                        # (T, PACK*5)


def _round_up(n, m):
    return ((n + m - 1) // m) * m


def toy_model_dp_forward(x, w1, b1, w2, b2, *, tile_b=8192):
    """x: (B, 10) float32.
    w1: (10, 10) PyTorch layout (out, in); b1: (10,)
    w2: (5, 10)  PyTorch layout (out, in); b2: (5,)
    Returns (B, 5) float32, matching net2(relu(net1(x)))."""
    B, in_f = x.shape
    hid = w1.shape[0]      # 10
    out_f = w2.shape[0]    # 5
    R = PACK

    # Glue (runs once, tiny): block-diagonal weights so each packed row of R batch
    # elements is transformed independently by a single lane-dense matmul.
    eye = jnp.eye(R, dtype=w1.dtype)
    w1_bd = jnp.kron(eye, jnp.transpose(w1))      # (R*in_f, R*hid)   = (640, 640)
    w2_bd = jnp.kron(eye, jnp.transpose(w2))      # (R*hid,  R*out_f) = (640, 320)
    b1_bd = jnp.tile(b1, R).reshape(1, R * hid)   # (1, 640)
    b2_bd = jnp.tile(b2, R).reshape(1, R * out_f)  # (1, 320)

    # Packed-row tiling: multiple of 8 rows per block for multi-tile grids,
    # or a single full-extent block for small B.
    rows = -(-B // R)                                   # packed rows needed
    tile_rows = max(8, ((tile_b // R) // 8) * 8)        # ~tile_b batch rows per step
    if rows <= tile_rows:
        tile_rows = rows                                # single block (full extent)
    rows_p = _round_up(rows, tile_rows)
    b_pad = rows_p * R
    if b_pad != B:
        x = jnp.pad(x, ((0, b_pad - B), (0, 0)))
    xp = x.reshape(rows_p, R * in_f)                    # order-preserving (free)
    grid = (rows_p // tile_rows,)

    cost = pl.CostEstimate(
        flops=2 * rows_p * (R * in_f) * (R * hid) + 2 * rows_p * (R * hid) * (R * out_f),
        transcendentals=0,
        bytes_accessed=4 * (b_pad * in_f + b_pad * out_f
                            + w1_bd.size + w2_bd.size + b1_bd.size + b2_bd.size),
    )

    const_map = lambda i: (0, 0)
    out = pl.pallas_call(
        _mlp_kernel,
        out_shape=jax.ShapeDtypeStruct((rows_p, R * out_f), jnp.float32),
        grid=grid,
        in_specs=[
            pl.BlockSpec((tile_rows, R * in_f), lambda i: (i, 0)),  # x: blocked over batch
            pl.BlockSpec((R * in_f, R * hid), const_map),           # block-diag W1^T (VMEM-resident)
            pl.BlockSpec((1, R * hid), const_map),                  # tiled b1
            pl.BlockSpec((R * hid, R * out_f), const_map),          # block-diag W2^T
            pl.BlockSpec((1, R * out_f), const_map),                # tiled b2
        ],
        out_specs=pl.BlockSpec((tile_rows, R * out_f), lambda i: (i, 0)),
        compiler_params=pltpu.CompilerParams(
            dimension_semantics=("parallel",),                      # megacore on v7x
        ),
        cost_estimate=cost,
    )(xp, w1_bd, b1_bd, w2_bd, b2_bd)

    # Unpack: (rows_p, R*out_f) -> (b_pad, out_f) is another free order-preserving reshape.
    return out.reshape(b_pad, out_f)[:B]


def _ref_forward(x, w1, b1, w2, b2):
    h = jnp.maximum(x @ w1.T + b1, 0.0)
    return h @ w2.T + b2


if __name__ == "__main__":
    key = jax.random.PRNGKey(0)
    kx, k1, k2, k3, k4 = jax.random.split(key, 5)

    # Deterministic parameters (shapes from nn.Linear(10,10) and nn.Linear(10,5)).
    w1 = jax.random.normal(k1, (10, 10), dtype=jnp.float32) * 0.1
    b1 = jax.random.normal(k2, (10,), dtype=jnp.float32) * 0.1
    w2 = jax.random.normal(k3, (5, 10), dtype=jnp.float32) * 0.1
    b2 = jax.random.normal(k4, (5,), dtype=jnp.float32) * 0.1

    # Small-batch path (single packed tile).
    B = 8
    x = jax.random.normal(kx, (B, 10), dtype=jnp.float32)
    out = jax.block_until_ready(toy_model_dp_forward(x, w1, b1, w2, b2))
    ref = _ref_forward(x, w1, b1, w2, b2)
    assert out.shape == (B, 5), out.shape
    assert jnp.allclose(out, ref, atol=1e-5, rtol=1e-5), "mismatch vs reference (small B)"

    # Multi-tile path (exercises grid, batch padding, packing, constant weight maps).
    B2 = 1000
    x2 = jax.random.normal(kx, (B2, 10), dtype=jnp.float32)
    out2 = jax.block_until_ready(toy_model_dp_forward(x2, w1, b1, w2, b2, tile_b=512))
    ref2 = _ref_forward(x2, w1, b1, w2, b2)
    assert out2.shape == (B2, 5), out2.shape
    assert jnp.allclose(out2, ref2, atol=1e-5, rtol=1e-5), "mismatch vs reference (tiled B)"

    print("KERNEL_OK")
</pallas_src>

<mosaic_0001>
module attributes {stable_mosaic.version = 11 : i64} {
  func.func @_mlp_kernel(%arg0: i32, %arg1: memref<1x640xf32, #tpu.memory_space<vmem>>, %arg2: memref<640x640xf32, #tpu.memory_space<vmem>>, %arg3: memref<1x640xf32, #tpu.memory_space<vmem>>, %arg4: memref<640x320xf32, #tpu.memory_space<vmem>>, %arg5: memref<1x320xf32, #tpu.memory_space<vmem>>, %arg6: memref<1x320xf32, #tpu.memory_space<vmem>>) attributes {dimension_semantics = [#tpu.dimension_semantics<parallel>], iteration_bounds = array<i64: 1>, scalar_prefetch = 0 : i64, scratch_operands = 0 : i64, tpu.core_type = #tpu.core_type<tc>, window_params = [{transform_indices = @transform_0, window_bounds = array<i64: 1, 640>}, {pipeline_mode = #tpu.pipeline_mode<synchronous>, transform_indices = @transform_1, window_bounds = array<i64: 640, 640>}, {pipeline_mode = #tpu.pipeline_mode<synchronous>, transform_indices = @transform_2, window_bounds = array<i64: 1, 640>}, {pipeline_mode = #tpu.pipeline_mode<synchronous>, transform_indices = @transform_3, window_bounds = array<i64: 640, 320>}, {pipeline_mode = #tpu.pipeline_mode<synchronous>, transform_indices = @transform_4, window_bounds = array<i64: 1, 320>}, {transform_indices = @transform_5, window_bounds = array<i64: 1, 320>}]} {
    %c0 = arith.constant 0 : index
    %c0_0 = arith.constant 0 : index
    %0 = vector.load %arg1[%c0, %c0_0] : memref<1x640xf32, #tpu.memory_space<vmem>>, vector<1x640xf32>
    %c0_1 = arith.constant 0 : index
    %c0_2 = arith.constant 0 : index
    %1 = vector.load %arg2[%c0_1, %c0_2] : memref<640x640xf32, #tpu.memory_space<vmem>>, vector<640x640xf32>
    %cst = arith.constant dense<0.000000e+00> : vector<1x640xf32>
    %2 = tpu.matmul %0, %1, %cst {dimension_numbers = #tpu.dot_dimension_numbers<[1], [0], [0], [1], [0, 0, 1, 1], [], []>} : vector<1x640xf32>, vector<640x640xf32>, vector<1x640xf32> -> vector<1x640xf32>
    %c0_3 = arith.constant 0 : index
    %c0_4 = arith.constant 0 : index
    %3 = vector.load %arg3[%c0_3, %c0_4] : memref<1x640xf32, #tpu.memory_space<vmem>>, vector<1x640xf32>
    %4 = arith.addf %2, %3 : vector<1x640xf32>
    %cst_5 = arith.constant 0.000000e+00 : f32
    %5 = vector.broadcast %cst_5 : f32 to vector<1x640xf32>
    %6 = arith.maximumf %4, %5 : vector<1x640xf32>
    %c0_6 = arith.constant 0 : index
    %c0_7 = arith.constant 0 : index
    %7 = vector.load %arg4[%c0_6, %c0_7] : memref<640x320xf32, #tpu.memory_space<vmem>>, vector<640x320xf32>
    %cst_8 = arith.constant dense<0.000000e+00> : vector<1x320xf32>
    %8 = tpu.matmul %6, %7, %cst_8 {dimension_numbers = #tpu.dot_dimension_numbers<[1], [0], [0], [1], [0, 0, 1, 1], [], []>} : vector<1x640xf32>, vector<640x320xf32>, vector<1x320xf32> -> vector<1x320xf32>
    %c0_9 = arith.constant 0 : index
    %c0_10 = arith.constant 0 : index
    %9 = vector.load %arg5[%c0_9, %c0_10] : memref<1x320xf32, #tpu.memory_space<vmem>>, vector<1x320xf32>
    %10 = arith.addf %8, %9 : vector<1x320xf32>
    %c0_11 = arith.constant 0 : index
    %c0_12 = arith.constant 0 : index
    %11 = vector.load %arg6[%c0_11, %c0_12] : memref<1x320xf32, #tpu.memory_space<vmem>>, vector<1x320xf32>
    tpu.vector_store %arg6[%c0_11, %c0_12], %10 {strides = array<i32>} : memref<1x320xf32, #tpu.memory_space<vmem>>, vector<1x320xf32>,
    return
  }
  func.func @transform_0(%arg0: i32) -> (i32, i32) {
    %c0_i32 = arith.constant 0 : i32
    %c0_i32_0 = arith.constant 0 : i32
    return %arg0, %c0_i32 : i32, i32
  }
  func.func @transform_1(%arg0: i32) -> (i32, i32) {
    %c0_i32 = arith.constant 0 : i32
    %c0_i32_0 = arith.constant 0 : i32
    %c0_i32_1 = arith.constant 0 : i32
    return %c0_i32, %c0_i32_0 : i32, i32
  }
  func.func @transform_2(%arg0: i32) -> (i32, i32) {
    %c0_i32 = arith.constant 0 : i32
    %c0_i32_0 = arith.constant 0 : i32
    %c0_i32_1 = arith.constant 0 : i32
    return %c0_i32, %c0_i32_0 : i32, i32
  }
  func.func @transform_3(%arg0: i32) -> (i32, i32) {
    %c0_i32 = arith.constant 0 : i32
    %c0_i32_0 = arith.constant 0 : i32
    %c0_i32_1 = arith.constant 0 : i32
    return %c0_i32, %c0_i32_0 : i32, i32
  }
  func.func @transform_4(%arg0: i32) -> (i32, i32) {
    %c0_i32 = arith.constant 0 : i32
    %c0_i32_0 = arith.constant 0 : i32
    %c0_i32_1 = arith.constant 0 : i32
    return %c0_i32, %c0_i32_0 : i32, i32
  }
  func.func @transform_5(%arg0: i32) -> (i32, i32) {
    %c0_i32 = arith.constant 0 : i32
    %c0_i32_0 = arith.constant 0 : i32
    return %arg0, %c0_i32 : i32, i32
  }
}

</mosaic_0001>

<llo_original>
// kernel: tpu_custom_call.1
$region0: #{tpu_custom_call.1}
  #allocation0 [shape = 'u32[]', space=smem, size = 0x4, offset = 0x4, fixed_abs, tag = 'smem constant byte address 0x4 - core index']
  #allocation1 [shape = 'u32[144,128]{1,0:T(1,128)}', space=vmem, size = 0x12000, scoped, tag = 'internal scratch']
  %s0 = inlined_call_operand.vmem [shape: f32[1,640], index: 0, kind: input, shape index: {}]
  %s1 = inlined_call_operand.vmem [shape: f32[640,640], index: 1, kind: input, shape index: {}]
  %s2 = inlined_call_operand.vmem [shape: f32[1,640], index: 2, kind: input, shape index: {}]
  %s3 = inlined_call_operand.vmem [shape: f32[640,320], index: 3, kind: input, shape index: {}]
  %s4 = inlined_call_operand.vmem [shape: f32[1,320], index: 4, kind: input, shape index: {}]
  %s5 = inlined_call_operand.hbm [shape: f32[1,320], index: 5, kind: output, shape index: {}]
  %s6 = sld [smem:[#allocation0]]
  $region30: #{tpu_custom_call.1} parent=0
    _
  %s8 = ssub.s32 1, %s6
  %s9 = scalar_select 0, %s8, %s6
  $region1: #{tpu_custom_call.1} parent=0
    #allocation2 [shape = 'u8[1536]{0}', space=vmem, size = 0x800, scoped, tag = 'output window, operand 0, single buffered']
    #allocation3 [shape = 's32[1]{0}', space=sflag, size = 0x4, scoped, tag = 'scoped memory for tpu_custom_call.1']
    %10 = vsyncpa [#allocation3], 0
    // Predicated region
    $region2: #{tpu_custom_call.1} parent=1 // pred_check
      _
    $region3: #{tpu_custom_call.1} parent=1 // pred_check_branch
      %12 = sbr.rel (0) target = $region5
    $region4: #{tpu_custom_call.1} parent=1 // pred_region
      _
    $region5: #{tpu_custom_call.1} parent=1 // pred_fallthru
      _
    // Predicated region
    $region6: #{tpu_custom_call.1} parent=1 // pred_check
      _
    $region7: #{tpu_custom_call.1} parent=1 // pred_check_branch
      %14 = sbr.rel (0) target = $region9
    $region8: #{tpu_custom_call.1} parent=1 // pred_region
      _
    $region9: #{tpu_custom_call.1} parent=1 // pred_fallthru
      _
    // Predicated region
    $region10: #{tpu_custom_call.1} parent=1 // pred_check
      _
    $region11: #{tpu_custom_call.1} parent=1 // pred_check_branch
      %16 = sbr.rel (0) target = $region13
    $region12: #{tpu_custom_call.1} parent=1 // pred_region
      _
    $region13: #{tpu_custom_call.1} parent=1 // pred_fallthru
      _
    // Predicated region
    $region14: #{tpu_custom_call.1} parent=1 // pred_check
      _
    $region15: #{tpu_custom_call.1} parent=1 // pred_check_branch
      %18 = sbr.rel (0) target = $region17
    $region16: #{tpu_custom_call.1} parent=1 // pred_region
      _
    $region17: #{tpu_custom_call.1} parent=1 // pred_fallthru
      _
    // Predicated region
    $region18: #{tpu_custom_call.1} parent=1 // pred_check
      _
    $region19: #{tpu_custom_call.1} parent=1 // pred_check_branch
      %20 = sbr.rel (0) target = $region21
    $region20: #{tpu_custom_call.1} parent=1 // pred_region
      _
    $region21: #{tpu_custom_call.1} parent=1 // pred_fallthru
      _
    %v21 = vld [vmem:[%s0] sm:$0x1f]
    %v22 = vld [vmem:[%s1] sm:$0xff]
    %v23 = vld [vmem:[%s1 + $0x8] sm:$0xff]
    %v24 = vld [vmem:[%s1 + $0x10] sm:$0xff]
    %v25 = vld [vmem:[%s1 + $0x18] sm:$0xff]
    %v26 = vld [vmem:[%s1 + $0x20] sm:$0xff]
    %v27 = vld [vmem:[%s1 + $0x28] sm:$0xff]
    %v28 = vld [vmem:[%s1 + $0x30] sm:$0xff]
    %v29 = vld [vmem:[%s1 + $0x38] sm:$0xff]
    %v30 = vld [vmem:[%s1 + $0x40] sm:$0xff]
    %v31 = vld [vmem:[%s1 + $0x48] sm:$0xff]
    %v32 = vld [vmem:[%s1 + $0x50] sm:$0xff]
    %v33 = vld [vmem:[%s1 + $0x58] sm:$0xff]
    %v34 = vld [vmem:[%s1 + $0x60] sm:$0xff]
    %v35 = vld [vmem:[%s1 + $0x68] sm:$0xff]
    %v36 = vld [vmem:[%s1 + $0x70] sm:$0xff]
    %v37 = vld [vmem:[%s1 + $0x78] sm:$0xff]
    %v38 = vld [vmem:[%s1 + $0x80] sm:$0xff]
    %v39 = vld [vmem:[%s1 + $0x88] sm:$0xff]
    %v40 = vld [vmem:[%s1 + $0x90] sm:$0xff]
    %v41 = vld [vmem:[%s1 + $0x98] sm:$0xff]
    %v42 = vld [vmem:[%s1 + $0xa0] sm:$0xff]
    %v43 = vld [vmem:[%s1 + $0xa8] sm:$0xff]
    %v44 = vld [vmem:[%s1 + $0xb0] sm:$0xff]
    %v45 = vld [vmem:[%s1 + $0xb8] sm:$0xff]
    %v46 = vld [vmem:[%s1 + $0xc0] sm:$0xff]
    %v47 = vld [vmem:[%s1 + $0xc8] sm:$0xff]
    %v48 = vld [vmem:[%s1 + $0xd0] sm:$0xff]
    %v49 = vld [vmem:[%s1 + $0xd8] sm:$0xff]
    %v50 = vld [vmem:[%s1 + $0xe0] sm:$0xff]
    %v51 = vld [vmem:[%s1 + $0xe8] sm:$0xff]
    %v52 = vld [vmem:[%s1 + $0xf0] sm:$0xff]
    %v53 = vld [vmem:[%s1 + $0xf8] sm:$0xff]
    %v54 = vld [vmem:[%s1 + $0x100] sm:$0xff]
    %v55 = vld [vmem:[%s1 + $0x108] sm:$0xff]
    %v56 = vld [vmem:[%s1 + $0x110] sm:$0xff]
    %v57 = vld [vmem:[%s1 + $0x118] sm:$0xff]
    %v58 = vld [vmem:[%s1 + $0x120] sm:$0xff]
    %v59 = vld [vmem:[%s1 + $0x128] sm:$0xff]
    %v60 = vld [vmem:[%s1 + $0x130] sm:$0xff]
    %v61 = vld [vmem:[%s1 + $0x138] sm:$0xff]
    %v62 = vld [vmem:[%s1 + $0x140] sm:$0xff]
    %v63 = vld [vmem:[%s1 + $0x148] sm:$0xff]
    %v64 = vld [vmem:[%s1 + $0x150] sm:$0xff]
    %v65 = vld [vmem:[%s1 + $0x158] sm:$0xff]
    %v66 = vld [vmem:[%s1 + $0x160] sm:$0xff]
    %v67 = vld [vmem:[%s1 + $0x168] sm:$0xff]
    %v68 = vld [vmem:[%s1 + $0x170] sm:$0xff]
    %v69 = vld [vmem:[%s1 + $0x178] sm:$0xff]
    %v70 = vld [vmem:[%s1 + $0x180] sm:$0xff]
    %v71 = vld [vmem:[%s1 + $0x188] sm:$0xff]
    %v72 = vld [vmem:[%s1 + $0x190] sm:$0xff]
    %v73 = vld [vmem:[%s1 + $0x198] sm:$0xff]
    %v74 = vld [vmem:[%s1 + $0x1a0] sm:$0xff]
    %v75 = vld [vmem:[%s1 + $0x1a8] sm:$0xff]
    %v76 = vld [vmem:[%s1 + $0x1b0] sm:$0xff]
    %v77 = vld [vmem:[%s1 + $0x1b8] sm:$0xff]
    %v78 = vld [vmem:[%s1 + $0x1c0] sm:$0xff]
    %v79 = vld [vmem:[%s1 + $0x1c8] sm:$0xff]
    %v80 = vld [vmem:[%s1 + $0x1d0] sm:$0xff]
    %v81 = vld [vmem:[%s1 + $0x1d8] sm:$0xff]
    %v82 = vld [vmem:[%s1 + $0x1e0] sm:$0xff]
    %v83 = vld [vmem:[%s1 + $0x1e8] sm:$0xff]
    %v84 = vld [vmem:[%s1 + $0x1f0] sm:$0xff]
    %v85 = vld [vmem:[%s1 + $0x1f8] sm:$0xff]
    %v86 = vld [vmem:[%s1 + $0x200] sm:$0xff]
    %v87 = vld [vmem:[%s1 + $0x208] sm:$0xff]
    %v88 = vld [vmem:[%s1 + $0x210] sm:$0xff]
    %v89 = vld [vmem:[%s1 + $0x218] sm:$0xff]
    %v90 = vld [vmem:[%s1 + $0x220] sm:$0xff]
    %v91 = vld [vmem:[%s1 + $0x228] sm:$0xff]
    %v92 = vld [vmem:[%s1 + $0x230] sm:$0xff]
    %v93 = vld [vmem:[%s1 + $0x238] sm:$0xff]
    %v94 = vld [vmem:[%s1 + $0x240] sm:$0xff]
    %v95 = vld [vmem:[%s1 + $0x248] sm:$0xff]
    %v96 = vld [vmem:[%s1 + $0x250] sm:$0xff]
    %v97 = vld [vmem:[%s1 + $0x258] sm:$0xff]
    %v98 = vld [vmem:[%s1 + $0x260] sm:$0xff]
    %v99 = vld [vmem:[%s1 + $0x268] sm:$0xff]
    %v100 = vld [vmem:[%s1 + $0x270] sm:$0xff]
    %v101 = vld [vmem:[%s1 + $0x278] sm:$0xff]
    %v102 = vld [vmem:[%s1 + $0x280] sm:$0xff]
    %v103 = vld [vmem:[%s1 + $0x288] sm:$0xff]
    %v104 = vld [vmem:[%s1 + $0x290] sm:$0xff]
    %v105 = vld [vmem:[%s1 + $0x298] sm:$0xff]
    %v106 = vld [vmem:[%s1 + $0x2a0] sm:$0xff]
    %v107 = vld [vmem:[%s1 + $0x2a8] sm:$0xff]
    %v108 = vld [vmem:[%s1 + $0x2b0] sm:$0xff]
    %v109 = vld [vmem:[%s1 + $0x2b8] sm:$0xff]
    %v110 = vld [vmem:[%s1 + $0x2c0] sm:$0xff]
    %v111 = vld [vmem:[%s1 + $0x2c8] sm:$0xff]
    %v112 = vld [vmem:[%s1 + $0x2d0] sm:$0xff]
    %v113 = vld [vmem:[%s1 + $0x2d8] sm:$0xff]
    %v114 = vld [vmem:[%s1 + $0x2e0] sm:$0xff]
    %v115 = vld [vmem:[%s1 + $0x2e8] sm:$0xff]
    %v116 = vld [vmem:[%s1 + $0x2f0] sm:$0xff]
    %v117 = vld [vmem:[%s1 + $0x2f8] sm:$0xff]
    %v118 = vld [vmem:[%s1 + $0x300] sm:$0xff]
    %v119 = vld [vmem:[%s1 + $0x308] sm:$0xff]
    %v120 = vld [vmem:[%s1 + $0x310] sm:$0xff]
    %v121 = vld [vmem:[%s1 + $0x318] sm:$0xff]
    %v122 = vld [vmem:[%s1 + $0x320] sm:$0xff]
    %v123 = vld [vmem:[%s1 + $0x328] sm:$0xff]
    %v124 = vld [vmem:[%s1 + $0x330] sm:$0xff]
    %v125 = vld [vmem:[%s1 + $0x338] sm:$0xff]
    %v126 = vld [vmem:[%s1 + $0x340] sm:$0xff]
    %v127 = vld [vmem:[%s1 + $0x348] sm:$0xff]
    %v128 = vld [vmem:[%s1 + $0x350] sm:$0xff]
    %v129 = vld [vmem:[%s1 + $0x358] sm:$0xff]
    %v130 = vld [vmem:[%s1 + $0x360] sm:$0xff]
    %v131 = vld [vmem:[%s1 + $0x368] sm:$0xff]
    %v132 = vld [vmem:[%s1 + $0x370] sm:$0xff]
    %v133 = vld [vmem:[%s1 + $0x378] sm:$0xff]
    %v134 = vld [vmem:[%s1 + $0x380] sm:$0xff]
    %v135 = vld [vmem:[%s1 + $0x388] sm:$0xff]
    %v136 = vld [vmem:[%s1 + $0x390] sm:$0xff]
    %v137 = vld [vmem:[%s1 + $0x398] sm:$0xff]
    %v138 = vld [vmem:[%s1 + $0x3a0] sm:$0xff]
    %v139 = vld [vmem:[%s1 + $0x3a8] sm:$0xff]
    %v140 = vld [vmem:[%s1 + $0x3b0] sm:$0xff]
    %v141 = vld [vmem:[%s1 + $0x3b8] sm:$0xff]
    %v142 = vld [vmem:[%s1 + $0x3c0] sm:$0xff]
    %v143 = vld [vmem:[%s1 + $0x3c8] sm:$0xff]
    %v144 = vld [vmem:[%s1 + $0x3d0] sm:$0xff]
    %v145 = vld [vmem:[%s1 + $0x3d8] sm:$0xff]
    %v146 = vld [vmem:[%s1 + $0x3e0] sm:$0xff]
    %v147 = vld [vmem:[%s1 + $0x3e8] sm:$0xff]
    %v148 = vld [vmem:[%s1 + $0x3f0] sm:$0xff]
    %v149 = vld [vmem:[%s1 + $0x3f8] sm:$0xff]
    %v150 = vld [vmem:[%s1 + $0x400] sm:$0xff]
    %v151 = vld [vmem:[%s1 + $0x408] sm:$0xff]
    %v152 = vld [vmem:[%s1 + $0x410] sm:$0xff]
    %v153 = vld [vmem:[%s1 + $0x418] sm:$0xff]
    %v154 = vld [vmem:[%s1 + $0x420] sm:$0xff]
    %v155 = vld [vmem:[%s1 + $0x428] sm:$0xff]
    %v156 = vld [vmem:[%s1 + $0x430] sm:$0xff]
    %v157 = vld [vmem:[%s1 + $0x438] sm:$0xff]
    %v158 = vld [vmem:[%s1 + $0x440] sm:$0xff]
    %v159 = vld [vmem:[%s1 + $0x448] sm:$0xff]
    %v160 = vld [vmem:[%s1 + $0x450] sm:$0xff]
    %v161 = vld [vmem:[%s1 + $0x458] sm:$0xff]
    %v162 = vld [vmem:[%s1 + $0x460] sm:$0xff]
    %v163 = vld [vmem:[%s1 + $0x468] sm:$0xff]
    %v164 = vld [vmem:[%s1 + $0x470] sm:$0xff]
    %v165 = vld [vmem:[%s1 + $0x478] sm:$0xff]
    %v166 = vld [vmem:[%s1 + $0x480] sm:$0xff]
    %v167 = vld [vmem:[%s1 + $0x488] sm:$0xff]
    %v168 = vld [vmem:[%s1 + $0x490] sm:$0xff]
    %v169 = vld [vmem:[%s1 + $0x498] sm:$0xff]
    %v170 = vld [vmem:[%s1 + $0x4a0] sm:$0xff]
    %v171 = vld [vmem:[%s1 + $0x4a8] sm:$0xff]
    %v172 = vld [vmem:[%s1 + $0x4b0] sm:$0xff]
    %v173 = vld [vmem:[%s1 + $0x4b8] sm:$0xff]
    %v174 = vld [vmem:[%s1 + $0x4c0] sm:$0xff]
    %v175 = vld [vmem:[%s1 + $0x4c8] sm:$0xff]
    %v176 = vld [vmem:[%s1 + $0x4d0] sm:$0xff]
    %v177 = vld [vmem:[%s1 + $0x4d8] sm:$0xff]
    %v178 = vld [vmem:[%s1 + $0x4e0] sm:$0xff]
    %v179 = vld [vmem:[%s1 + $0x4e8] sm:$0xff]
    %v180 = vld [vmem:[%s1 + $0x4f0] sm:$0xff]
    %v181 = vld [vmem:[%s1 + $0x4f8] sm:$0xff]
    %v182 = vld [vmem:[%s1 + $0x500] sm:$0xff]
    %v183 = vld [vmem:[%s1 + $0x508] sm:$0xff]
    %v184 = vld [vmem:[%s1 + $0x510] sm:$0xff]
    %v185 = vld [vmem:[%s1 + $0x518] sm:$0xff]
    %v186 = vld [vmem:[%s1 + $0x520] sm:$0xff]
    %v187 = vld [vmem:[%s1 + $0x528] sm:$0xff]
    %v188 = vld [vmem:[%s1 + $0x530] sm:$0xff]
    %v189 = vld [vmem:[%s1 + $0x538] sm:$0xff]
    %v190 = vld [vmem:[%s1 + $0x540] sm:$0xff]
    %v191 = vld [vmem:[%s1 + $0x548] sm:$0xff]
    %v192 = vld [vmem:[%s1 + $0x550] sm:$0xff]
    %v193 = vld [vmem:[%s1 + $0x558] sm:$0xff]
    %v194 = vld [vmem:[%s1 + $0x560] sm:$0xff]
    %v195 = vld [vmem:[%s1 + $0x568] sm:$0xff]
    %v196 = vld [vmem:[%s1 + $0x570] sm:$0xff]
    %v197 = vld [vmem:[%s1 + $0x578] sm:$0xff]
    %v198 = vld [vmem:[%s1 + $0x580] sm:$0xff]
    %v199 = vld [vmem:[%s1 + $0x588] sm:$0xff]
    %v200 = vld [vmem:[%s1 + $0x590] sm:$0xff]
    %v201 = vld [vmem:[%s1 + $0x598] sm:$0xff]
    %v202 = vld [vmem:[%s1 + $0x5a0] sm:$0xff]
    %v203 = vld [vmem:[%s1 + $0x5a8] sm:$0xff]
    %v204 = vld [vmem:[%s1 + $0x5b0] sm:$0xff]
    %v205 = vld [vmem:[%s1 + $0x5b8] sm:$0xff]
    %v206 = vld [vmem:[%s1 + $0x5c0] sm:$0xff]
    %v207 = vld [vmem:[%s1 + $0x5c8] sm:$0xff]
    %v208 = vld [vmem:[%s1 + $0x5d0] sm:$0xff]
    %v209 = vld [vmem:[%s1 + $0x5d8] sm:$0xff]
    %v210 = vld [vmem:[%s1 + $0x5e0] sm:$0xff]
    %v211 = vld [vmem:[%s1 + $0x5e8] sm:$0xff]
    %v212 = vld [vmem:[%s1 + $0x5f0] sm:$0xff]
    %v213 = vld [vmem:[%s1 + $0x5f8] sm:$0xff]
    %v214 = vld [vmem:[%s1 + $0x600] sm:$0xff]
    %v215 = vld [vmem:[%s1 + $0x608] sm:$0xff]
    %v216 = vld [vmem:[%s1 + $0x610] sm:$0xff]
    %v217 = vld [vmem:[%s1 + $0x618] sm:$0xff]
    %v218 = vld [vmem:[%s1 + $0x620] sm:$0xff]
    %v219 = vld [vmem:[%s1 + $0x628] sm:$0xff]
    %v220 = vld [vmem:[%s1 + $0x630] sm:$0xff]
    %v221 = vld [vmem:[%s1 + $0x638] sm:$0xff]
    %v222 = vld [vmem:[%s1 + $0x640] sm:$0xff]
    %v223 = vld [vmem:[%s1 + $0x648] sm:$0xff]
    %v224 = vld [vmem:[%s1 + $0x650] sm:$0xff]
    %v225 = vld [vmem:[%s1 + $0x658] sm:$0xff]
    %v226 = vld [vmem:[%s1 + $0x660] sm:$0xff]
    %v227 = vld [vmem:[%s1 + $0x668] sm:$0xff]
    %v228 = vld [vmem:[%s1 + $0x670] sm:$0xff]
    %v229 = vld [vmem:[%s1 + $0x678] sm:$0xff]
    %v230 = vld [vmem:[%s1 + $0x680] sm:$0xff]
    %v231 = vld [vmem:[%s1 + $0x688] sm:$0xff]
    %v232 = vld [vmem:[%s1 + $0x690] sm:$0xff]
    %v233 = vld [vmem:[%s1 + $0x698] sm:$0xff]
    %v234 = vld [vmem:[%s1 + $0x6a0] sm:$0xff]
    %v235 = vld [vmem:[%s1 + $0x6a8] sm:$0xff]
    %v236 = vld [vmem:[%s1 + $0x6b0] sm:$0xff]
    %v237 = vld [vmem:[%s1 + $0x6b8] sm:$0xff]
    %v238 = vld [vmem:[%s1 + $0x6c0] sm:$0xff]
    %v239 = vld [vmem:[%s1 + $0x6c8] sm:$0xff]
    %v240 = vld [vmem:[%s1 + $0x6d0] sm:$0xff]
    %v241 = vld [vmem:[%s1 + $0x6d8] sm:$0xff]
    %v242 = vld [vmem:[%s1 + $0x6e0] sm:$0xff]
    %v243 = vld [vmem:[%s1 + $0x6e8] sm:$0xff]
    %v244 = vld [vmem:[%s1 + $0x6f0] sm:$0xff]
    %v245 = vld [vmem:[%s1 + $0x6f8] sm:$0xff]
    %v246 = vld [vmem:[%s1 + $0x700] sm:$0xff]
    %v247 = vld [vmem:[%s1 + $0x708] sm:$0xff]
    %v248 = vld [vmem:[%s1 + $0x710] sm:$0xff]
    %v249 = vld [vmem:[%s1 + $0x718] sm:$0xff]
    %v250 = vld [vmem:[%s1 + $0x720] sm:$0xff]
    %v251 = vld [vmem:[%s1 + $0x728] sm:$0xff]
    %v252 = vld [vmem:[%s1 + $0x730] sm:$0xff]
    %v253 = vld [vmem:[%s1 + $0x738] sm:$0xff]
    %v254 = vld [vmem:[%s1 + $0x740] sm:$0xff]
    %v255 = vld [vmem:[%s1 + $0x748] sm:$0xff]
    %v256 = vld [vmem:[%s1 + $0x750] sm:$0xff]
    %v257 = vld [vmem:[%s1 + $0x758] sm:$0xff]
    %v258 = vld [vmem:[%s1 + $0x760] sm:$0xff]
    %v259 = vld [vmem:[%s1 + $0x768] sm:$0xff]
    %v260 = vld [vmem:[%s1 + $0x770] sm:$0xff]
    %v261 = vld [vmem:[%s1 + $0x778] sm:$0xff]
    %v262 = vld [vmem:[%s1 + $0x780] sm:$0xff]
    %v263 = vld [vmem:[%s1 + $0x788] sm:$0xff]
    %v264 = vld [vmem:[%s1 + $0x790] sm:$0xff]
    %v265 = vld [vmem:[%s1 + $0x798] sm:$0xff]
    %v266 = vld [vmem:[%s1 + $0x7a0] sm:$0xff]
    %v267 = vld [vmem:[%s1 + $0x7a8] sm:$0xff]
    %v268 = vld [vmem:[%s1 + $0x7b0] sm:$0xff]
    %v269 = vld [vmem:[%s1 + $0x7b8] sm:$0xff]
    %v270 = vld [vmem:[%s1 + $0x7c0] sm:$0xff]
    %v271 = vld [vmem:[%s1 + $0x7c8] sm:$0xff]
    %v272 = vld [vmem:[%s1 + $0x7d0] sm:$0xff]
    %v273 = vld [vmem:[%s1 + $0x7d8] sm:$0xff]
    %v274 = vld [vmem:[%s1 + $0x7e0] sm:$0xff]
    %v275 = vld [vmem:[%s1 + $0x7e8] sm:$0xff]
    %v276 = vld [vmem:[%s1 + $0x7f0] sm:$0xff]
    %v277 = vld [vmem:[%s1 + $0x7f8] sm:$0xff]
    %v278 = vld [vmem:[%s1 + $0x800] sm:$0xff]
    %v279 = vld [vmem:[%s1 + $0x808] sm:$0xff]
    %v280 = vld [vmem:[%s1 + $0x810] sm:$0xff]
    %v281 = vld [vmem:[%s1 + $0x818] sm:$0xff]
    %v282 = vld [vmem:[%s1 + $0x820] sm:$0xff]
    %v283 = vld [vmem:[%s1 + $0x828] sm:$0xff]
    %v284 = vld [vmem:[%s1 + $0x830] sm:$0xff]
    %v285 = vld [vmem:[%s1 + $0x838] sm:$0xff]
    %v286 = vld [vmem:[%s1 + $0x840] sm:$0xff]
    %v287 = vld [vmem:[%s1 + $0x848] sm:$0xff]
    %v288 = vld [vmem:[%s1 + $0x850] sm:$0xff]
    %v289 = vld [vmem:[%s1 + $0x858] sm:$0xff]
    %v290 = vld [vmem:[%s1 + $0x860] sm:$0xff]
    %v291 = vld [vmem:[%s1 + $0x868] sm:$0xff]
    %v292 = vld [vmem:[%s1 + $0x870] sm:$0xff]
    %v293 = vld [vmem:[%s1 + $0x878] sm:$0xff]
    %v294 = vld [vmem:[%s1 + $0x880] sm:$0xff]
    %v295 = vld [vmem:[%s1 + $0x888] sm:$0xff]
    %v296 = vld [vmem:[%s1 + $0x890] sm:$0xff]
    %v297 = vld [vmem:[%s1 + $0x898] sm:$0xff]
    %v298 = vld [vmem:[%s1 + $0x8a0] sm:$0xff]
    %v299 = vld [vmem:[%s1 + $0x8a8] sm:$0xff]
    %v300 = vld [vmem:[%s1 + $0x8b0] sm:$0xff]
    %v301 = vld [vmem:[%s1 + $0x8b8] sm:$0xff]
    %v302 = vld [vmem:[%s1 + $0x8c0] sm:$0xff]
    %v303 = vld [vmem:[%s1 + $0x8c8] sm:$0xff]
    %v304 = vld [vmem:[%s1 + $0x8d0] sm:$0xff]
    %v305 = vld [vmem:[%s1 + $0x8d8] sm:$0xff]
    %v306 = vld [vmem:[%s1 + $0x8e0] sm:$0xff]
    %v307 = vld [vmem:[%s1 + $0x8e8] sm:$0xff]
    %v308 = vld [vmem:[%s1 + $0x8f0] sm:$0xff]
    %v309 = vld [vmem:[%s1 + $0x8f8] sm:$0xff]
    %v310 = vld [vmem:[%s1 + $0x900] sm:$0xff]
    %v311 = vld [vmem:[%s1 + $0x908] sm:$0xff]
    %v312 = vld [vmem:[%s1 + $0x910] sm:$0xff]
    %v313 = vld [vmem:[%s1 + $0x918] sm:$0xff]
    %v314 = vld [vmem:[%s1 + $0x920] sm:$0xff]
    %v315 = vld [vmem:[%s1 + $0x928] sm:$0xff]
    %v316 = vld [vmem:[%s1 + $0x930] sm:$0xff]
    %v317 = vld [vmem:[%s1 + $0x938] sm:$0xff]
    %v318 = vld [vmem:[%s1 + $0x940] sm:$0xff]
    %v319 = vld [vmem:[%s1 + $0x948] sm:$0xff]
    %v320 = vld [vmem:[%s1 + $0x950] sm:$0xff]
    %v321 = vld [vmem:[%s1 + $0x958] sm:$0xff]
    %v322 = vld [vmem:[%s1 + $0x960] sm:$0xff]
    %v323 = vld [vmem:[%s1 + $0x968] sm:$0xff]
    %v324 = vld [vmem:[%s1 + $0x970] sm:$0xff]
    %v325 = vld [vmem:[%s1 + $0x978] sm:$0xff]
    %v326 = vld [vmem:[%s1 + $0x980] sm:$0xff]
    %v327 = vld [vmem:[%s1 + $0x988] sm:$0xff]
    %v328 = vld [vmem:[%s1 + $0x990] sm:$0xff]
    %v329 = vld [vmem:[%s1 + $0x998] sm:$0xff]
    %v330 = vld [vmem:[%s1 + $0x9a0] sm:$0xff]
    %v331 = vld [vmem:[%s1 + $0x9a8] sm:$0xff]
    %v332 = vld [vmem:[%s1 + $0x9b0] sm:$0xff]
    %v333 = vld [vmem:[%s1 + $0x9b8] sm:$0xff]
    %v334 = vld [vmem:[%s1 + $0x9c0] sm:$0xff]
    %v335 = vld [vmem:[%s1 + $0x9c8] sm:$0xff]
    %v336 = vld [vmem:[%s1 + $0x9d0] sm:$0xff]
    %v337 = vld [vmem:[%s1 + $0x9d8] sm:$0xff]
    %v338 = vld [vmem:[%s1 + $0x9e0] sm:$0xff]
    %v339 = vld [vmem:[%s1 + $0x9e8] sm:$0xff]
    %v340 = vld [vmem:[%s1 + $0x9f0] sm:$0xff]
    %v341 = vld [vmem:[%s1 + $0x9f8] sm:$0xff]
    %v342 = vld [vmem:[%s1 + $0xa00] sm:$0xff]
    %v343 = vld [vmem:[%s1 + $0xa08] sm:$0xff]
    %v344 = vld [vmem:[%s1 + $0xa10] sm:$0xff]
    %v345 = vld [vmem:[%s1 + $0xa18] sm:$0xff]
    %v346 = vld [vmem:[%s1 + $0xa20] sm:$0xff]
    %v347 = vld [vmem:[%s1 + $0xa28] sm:$0xff]
    %v348 = vld [vmem:[%s1 + $0xa30] sm:$0xff]
    %v349 = vld [vmem:[%s1 + $0xa38] sm:$0xff]
    %v350 = vld [vmem:[%s1 + $0xa40] sm:$0xff]
    %v351 = vld [vmem:[%s1 + $0xa48] sm:$0xff]
    %v352 = vld [vmem:[%s1 + $0xa50] sm:$0xff]
    %v353 = vld [vmem:[%s1 + $0xa58] sm:$0xff]
    %v354 = vld [vmem:[%s1 + $0xa60] sm:$0xff]
    %v355 = vld [vmem:[%s1 + $0xa68] sm:$0xff]
    %v356 = vld [vmem:[%s1 + $0xa70] sm:$0xff]
    %v357 = vld [vmem:[%s1 + $0xa78] sm:$0xff]
    %v358 = vld [vmem:[%s1 + $0xa80] sm:$0xff]
    %v359 = vld [vmem:[%s1 + $0xa88] sm:$0xff]
    %v360 = vld [vmem:[%s1 + $0xa90] sm:$0xff]
    %v361 = vld [vmem:[%s1 + $0xa98] sm:$0xff]
    %v362 = vld [vmem:[%s1 + $0xaa0] sm:$0xff]
    %v363 = vld [vmem:[%s1 + $0xaa8] sm:$0xff]
    %v364 = vld [vmem:[%s1 + $0xab0] sm:$0xff]
    %v365 = vld [vmem:[%s1 + $0xab8] sm:$0xff]
    %v366 = vld [vmem:[%s1 + $0xac0] sm:$0xff]
    %v367 = vld [vmem:[%s1 + $0xac8] sm:$0xff]
    %v368 = vld [vmem:[%s1 + $0xad0] sm:$0xff]
    %v369 = vld [vmem:[%s1 + $0xad8] sm:$0xff]
    %v370 = vld [vmem:[%s1 + $0xae0] sm:$0xff]
    %v371 = vld [vmem:[%s1 + $0xae8] sm:$0xff]
    %v372 = vld [vmem:[%s1 + $0xaf0] sm:$0xff]
    %v373 = vld [vmem:[%s1 + $0xaf8] sm:$0xff]
    %v374 = vld [vmem:[%s1 + $0xb00] sm:$0xff]
    %v375 = vld [vmem:[%s1 + $0xb08] sm:$0xff]
    %v376 = vld [vmem:[%s1 + $0xb10] sm:$0xff]
    %v377 = vld [vmem:[%s1 + $0xb18] sm:$0xff]
    %v378 = vld [vmem:[%s1 + $0xb20] sm:$0xff]
    %v379 = vld [vmem:[%s1 + $0xb28] sm:$0xff]
    %v380 = vld [vmem:[%s1 + $0xb30] sm:$0xff]
    %v381 = vld [vmem:[%s1 + $0xb38] sm:$0xff]
    %v382 = vld [vmem:[%s1 + $0xb40] sm:$0xff]
    %v383 = vld [vmem:[%s1 + $0xb48] sm:$0xff]
    %v384 = vld [vmem:[%s1 + $0xb50] sm:$0xff]
    %v385 = vld [vmem:[%s1 + $0xb58] sm:$0xff]
    %v386 = vld [vmem:[%s1 + $0xb60] sm:$0xff]
    %v387 = vld [vmem:[%s1 + $0xb68] sm:$0xff]
    %v388 = vld [vmem:[%s1 + $0xb70] sm:$0xff]
    %v389 = vld [vmem:[%s1 + $0xb78] sm:$0xff]
    %v390 = vld [vmem:[%s1 + $0xb80] sm:$0xff]
    %v391 = vld [vmem:[%s1 + $0xb88] sm:$0xff]
    %v392 = vld [vmem:[%s1 + $0xb90] sm:$0xff]
    %v393 = vld [vmem:[%s1 + $0xb98] sm:$0xff]
    %v394 = vld [vmem:[%s1 + $0xba0] sm:$0xff]
    %v395 = vld [vmem:[%s1 + $0xba8] sm:$0xff]
    %v396 = vld [vmem:[%s1 + $0xbb0] sm:$0xff]
    %v397 = vld [vmem:[%s1 + $0xbb8] sm:$0xff]
    %v398 = vld [vmem:[%s1 + $0xbc0] sm:$0xff]
    %v399 = vld [vmem:[%s1 + $0xbc8] sm:$0xff]
    %v400 = vld [vmem:[%s1 + $0xbd0] sm:$0xff]
    %v401 = vld [vmem:[%s1 + $0xbd8] sm:$0xff]
    %v402 = vld [vmem:[%s1 + $0xbe0] sm:$0xff]
    %v403 = vld [vmem:[%s1 + $0xbe8] sm:$0xff]
    %v404 = vld [vmem:[%s1 + $0xbf0] sm:$0xff]
    %v405 = vld [vmem:[%s1 + $0xbf8] sm:$0xff]
    %v406 = vld [vmem:[%s1 + $0xc00] sm:$0xff]
    %v407 = vld [vmem:[%s1 + $0xc08] sm:$0xff]
    %v408 = vld [vmem:[%s1 + $0xc10] sm:$0xff]
    %v409 = vld [vmem:[%s1 + $0xc18] sm:$0xff]
    %v410 = vld [vmem:[%s1 + $0xc20] sm:$0xff]
    %v411 = vld [vmem:[%s1 + $0xc28] sm:$0xff]
    %v412 = vld [vmem:[%s1 + $0xc30] sm:$0xff]
    %v413 = vld [vmem:[%s1 + $0xc38] sm:$0xff]
    %v414 = vld [vmem:[%s1 + $0xc40] sm:$0xff]
    %v415 = vld [vmem:[%s1 + $0xc48] sm:$0xff]
    %v416 = vld [vmem:[%s1 + $0xc50] sm:$0xff]
    %v417 = vld [vmem:[%s1 + $0xc58] sm:$0xff]
    %v418 = vld [vmem:[%s1 + $0xc60] sm:$0xff]
    %v419 = vld [vmem:[%s1 + $0xc68] sm:$0xff]
    %v420 = vld [vmem:[%s1 + $0xc70] sm:$0xff]
    %v421 = vld [vmem:[%s1 + $0xc78] sm:$0xff]
    %v422 = vld [vmem:[%s2] sm:$0x1f]
    %v424 = vlaneseq
    %v425 = vshrl.u32 %v424, 7
    %v426 = vsub.s32 0, %v425
    %v427 = vrot.slane %v21, %v426
    %v428 = vlaneseq
    %v429 = vshrl.u32 %v428, 7
    %v430 = vsub.s32 1, %v429
    %v431 = vrot.slane %v21, %v430
    %v432 = vlaneseq
    %v433 = vshrl.u32 %v432, 7
    %v434 = vsub.s32 2, %v433
    %v435 = vrot.slane %v21, %v434
    %v436 = vlaneseq
    %v437 = vshrl.u32 %v436, 7
    %v438 = vsub.s32 3, %v437
    %v439 = vrot.slane %v21, %v438
    %v440 = vlaneseq
    %v441 = vshrl.u32 %v440, 7
    %v442 = vsub.s32 4, %v441
    %v443 = vrot.slane %v21, %v442
    %v450 = vlaneseq
    %v451 = vshrl.u32 %v450, 7
    %v452 = vsub.s32 0, %v451
    %v453 = vrot.slane %v422, %v452
    %v454 = vlaneseq
    %v455 = vshrl.u32 %v454, 7
    %v456 = vsub.s32 1, %v455
    %v457 = vrot.slane %v422, %v456
    %v458 = vlaneseq
    %v459 = vshrl.u32 %v458, 7
    %v460 = vsub.s32 2, %v459
    %v461 = vrot.slane %v422, %v460
    %v462 = vlaneseq
    %v463 = vshrl.u32 %v462, 7
    %v464 = vsub.s32 3, %v463
    %v465 = vrot.slane %v422, %v464
    %v466 = vlaneseq
    %v467 = vshrl.u32 %v466, 7
    %v468 = vsub.s32 4, %v467
    %v469 = vrot.slane %v422, %v468
    %475 = vmatprep.subr.mxu0 %v23
    %476 = vmatpush1.msra.mxu0 %v22
    %477 = vmatprep.subr.mxu0 %v28
    %478 = vmatpush1.msra.mxu0 %v27
    %479 = vmatprep.subr.mxu0 %v33
    %480 = vmatpush1.msra.mxu0 %v32
    %481 = vmatprep.subr.mxu0 %v38
    %482 = vmatpush1.msra.mxu0 %v37
    %483 = vmatprep.subr.mxu0 %v43
    %484 = vmatpush1.msra.mxu0 %v42
    %485 = vmatprep.subr.mxu0 %v48
    %486 = vmatpush1.msra.mxu0 %v47
    %487 = vmatprep.subr.mxu0 %v53
    %488 = vmatpush1.msra.mxu0 %v52
    %489 = vmatprep.subr.mxu0 %v58
    %490 = vmatpush1.msra.mxu0 %v57
    %491 = vmatprep.subr.mxu0 %v63
    %492 = vmatpush1.msra.mxu0 %v62
    %493 = vmatprep.subr.mxu0 %v68
    %494 = vmatpush1.msra.mxu0 %v67
    %495 = vmatprep.subr.mxu0 %v73
    %496 = vmatpush1.msra.mxu0 %v72
    %497 = vmatprep.subr.mxu0 %v78
    %498 = vmatpush1.msra.mxu0 %v77
    %499 = vmatprep.subr.mxu0 %v83
    %500 = vmatpush1.msra.mxu0 %v82
    %501 = vmatprep.subr.mxu0 %v88
    %502 = vmatpush1.msra.mxu0 %v87
    %503 = vmatprep.subr.mxu0 %v93
    %504 = vmatpush1.msra.mxu0 %v92
    %505 = vmatprep.subr.mxu0 %v98
    %506 = vmatpush1.msra.mxu0 %v97
    %507 = vmatprep.subr.mxu0 %v103
    %508 = vmatpush1.msra.mxu0 %v102
    %509 = vmatprep.subr.mxu0 %v108
    %510 = vmatpush1.msra.mxu0 %v107
    %511 = vmatprep.subr.mxu0 %v113
    %512 = vmatpush1.msra.mxu0 %v112
    %513 = vmatprep.subr.mxu0 %v118
    %514 = vmatpush1.msra.mxu0 %v117
    %515 = vmatprep.subr.mxu0 %v123
    %516 = vmatpush1.msra.mxu0 %v122
    %517 = vmatprep.subr.mxu0 %v128
    %518 = vmatpush1.msra.mxu0 %v127
    %519 = vmatprep.subr.mxu0 %v133
    %520 = vmatpush1.msra.mxu0 %v132
    %521 = vmatprep.subr.mxu0 %v138
    %522 = vmatpush1.msra.mxu0 %v137
    %523 = vmatprep.subr.mxu0 %v143
    %524 = vmatpush1.msra.mxu0 %v142
    %525 = vmatprep.subr.mxu0 %v148
    %526 = vmatpush1.msra.mxu0 %v147
    %527 = vmatprep.subr.mxu0 %v153
    %528 = vmatpush1.msra.mxu0 %v152
    %529 = vmatprep.subr.mxu0 %v158
    %530 = vmatpush1.msra.mxu0 %v157
    %531 = vmatprep.subr.mxu0 %v163
    %532 = vmatpush1.msra.mxu0 %v162
    %533 = vmatprep.subr.mxu0 %v168
    %534 = vmatpush1.msra.mxu0 %v167
    %535 = vmatprep.subr.mxu0 %v173
    %536 = vmatpush1.msra.mxu0 %v172
    %537 = vmatprep.subr.mxu0 %v178
    %538 = vmatpush1.msra.mxu0 %v177
    %539 = vmatprep.mubr.f32.mxu0 %v431
    %540 = vmatmul.mubr.f32.gmra.mrb[0].mxu0 %v427
    %v541 = vpop.f32.mrb[0].mxu0
    %v542 = vadd.f32 %v453, %v541
    %v543 = vpop.f32.mrb[0].mxu0
    %v544 = vadd.f32 %v457, %v543
    %545 = vdwg.mxu0
    %546 = vmatprep.subr.mxu0 %v183
    %547 = vmatpush1.msra.mxu0 %v182
    %548 = vmatprep.subr.mxu0 %v188
    %549 = vmatpush1.msra.mxu0 %v187
    %550 = vmatprep.subr.mxu0 %v193
    %551 = vmatpush1.msra.mxu0 %v192
    %552 = vmatprep.subr.mxu0 %v198
    %553 = vmatpush1.msra.mxu0 %v197
    %554 = vmatprep.subr.mxu0 %v203
    %555 = vmatpush1.msra.mxu0 %v202
    %556 = vmatprep.subr.mxu0 %v208
    %557 = vmatpush1.msra.mxu0 %v207
    %558 = vmatprep.subr.mxu0 %v213
    %559 = vmatpush1.msra.mxu0 %v212
    %560 = vmatprep.subr.mxu0 %v218
    %561 = vmatpush1.msra.mxu0 %v217
    %562 = vmatprep.subr.mxu0 %v223
    %563 = vmatpush1.msra.mxu0 %v222
    %564 = vmatprep.subr.mxu0 %v228
    %565 = vmatpush1.msra.mxu0 %v227
    %566 = vmatprep.subr.mxu0 %v233
    %567 = vmatpush1.msra.mxu0 %v232
    %568 = vmatprep.subr.mxu0 %v238
    %569 = vmatpush1.msra.mxu0 %v237
    %570 = vmatprep.subr.mxu0 %v243
    %571 = vmatpush1.msra.mxu0 %v242
    %572 = vmatprep.subr.mxu0 %v248
    %573 = vmatpush1.msra.mxu0 %v247
    %574 = vmatprep.subr.mxu0 %v253
    %575 = vmatpush1.msra.mxu0 %v252
    %576 = vmatprep.subr.mxu0 %v258
    %577 = vmatpush1.msra.mxu0 %v257
    %578 = vmatprep.subr.mxu0 %v263
    %579 = vmatpush1.msra.mxu0 %v262
    %580 = vmatprep.subr.mxu0 %v268
    %581 = vmatpush1.msra.mxu0 %v267
    %582 = vmatprep.subr.mxu0 %v273
    %583 = vmatpush1.msra.mxu0 %v272
    %584 = vmatprep.subr.mxu0 %v278
    %585 = vmatpush1.msra.mxu0 %v277
    %586 = vmatprep.subr.mxu0 %v283
    %587 = vmatpush1.msra.mxu0 %v282
    %588 = vmatprep.subr.mxu0 %v288
    %589 = vmatpush1.msra.mxu0 %v287
    %590 = vmatprep.subr.mxu0 %v293
    %591 = vmatpush1.msra.mxu0 %v292
    %592 = vmatprep.subr.mxu0 %v298
    %593 = vmatpush1.msra.mxu0 %v297
    %594 = vmatprep.subr.mxu0 %v303
    %595 = vmatpush1.msra.mxu0 %v302
    %596 = vmatprep.subr.mxu0 %v308
    %597 = vmatpush1.msra.mxu0 %v307
    %598 = vmatprep.subr.mxu0 %v313
    %599 = vmatpush1.msra.mxu0 %v312
    %600 = vmatprep.subr.mxu0 %v318
    %601 = vmatpush1.msra.mxu0 %v317
    %602 = vmatprep.subr.mxu0 %v323
    %603 = vmatpush1.msra.mxu0 %v322
    %604 = vmatprep.subr.mxu0 %v328
    %605 = vmatpush1.msra.mxu0 %v327
    %606 = vmatprep.subr.mxu0 %v333
    %607 = vmatpush1.msra.mxu0 %v332
    %608 = vmatprep.subr.mxu0 %v338
    %609 = vmatpush1.msra.mxu0 %v337
    %610 = vmatprep.mubr.f32.mxu0 %v439
    %611 = vmatmul.mubr.f32.gmra.mrb[0].mxu0 %v435
    %v612 = vpop.f32.mrb[0].mxu0
    %v613 = vadd.f32 %v542, %v612
    %v614 = vpop.f32.mrb[0].mxu0
    %v615 = vadd.f32 %v544, %v614
    %616 = vdwg.mxu0
    %617 = vmatprep.subr.mxu0 %v343
    %618 = vmatpush1.msra.mxu0 %v342
    %619 = vmatprep.subr.mxu0 %v348
    %620 = vmatpush1.msra.mxu0 %v347
    %621 = vmatprep.subr.mxu0 %v353
    %622 = vmatpush1.msra.mxu0 %v352
    %623 = vmatprep.subr.mxu0 %v358
    %624 = vmatpush1.msra.mxu0 %v357
    %625 = vmatprep.subr.mxu0 %v363
    %626 = vmatpush1.msra.mxu0 %v362
    %627 = vmatprep.subr.mxu0 %v368
    %628 = vmatpush1.msra.mxu0 %v367
    %629 = vmatprep.subr.mxu0 %v373
    %630 = vmatpush1.msra.mxu0 %v372
    %631 = vmatprep.subr.mxu0 %v378
    %632 = vmatpush1.msra.mxu0 %v377
    %633 = vmatprep.subr.mxu0 %v383
    %634 = vmatpush1.msra.mxu0 %v382
    %635 = vmatprep.subr.mxu0 %v388
    %636 = vmatpush1.msra.mxu0 %v387
    %637 = vmatprep.subr.mxu0 %v393
    %638 = vmatpush1.msra.mxu0 %v392
    %639 = vmatprep.subr.mxu0 %v398
    %640 = vmatpush1.msra.mxu0 %v397
    %641 = vmatprep.subr.mxu0 %v403
    %642 = vmatpush1.msra.mxu0 %v402
    %643 = vmatprep.subr.mxu0 %v408
    %644 = vmatpush1.msra.mxu0 %v407
    %645 = vmatprep.subr.mxu0 %v413
    %646 = vmatpush1.msra.mxu0 %v412
    %647 = vmatprep.subr.mxu0 %v418
    %648 = vmatpush1.msra.mxu0 %v417
    %649 = vmatprep.subr.mxu0 0.0
    %650 = vmatpush1.msra.mxu0 0.0
    %651 = vmatprep.subr.mxu0 0.0
    %652 = vmatpush1.msra.mxu0 0.0
    %653 = vmatprep.subr.mxu0 0.0
    %654 = vmatpush1.msra.mxu0 0.0
    %655 = vmatprep.subr.mxu0 0.0
    %656 = vmatpush1.msra.mxu0 0.0
    %657 = vmatprep.subr.mxu0 0.0
    %658 = vmatpush1.msra.mxu0 0.0
    %659 = vmatprep.subr.mxu0 0.0
    %660 = vmatpush1.msra.mxu0 0.0
    %661 = vmatprep.subr.mxu0 0.0
    %662 = vmatpush1.msra.mxu0 0.0
    %663 = vmatprep.subr.mxu0 0.0
    %664 = vmatpush1.msra.mxu0 0.0
    %665 = vmatprep.subr.mxu0 0.0
    %666 = vmatpush1.msra.mxu0 0.0
    %667 = vmatprep.subr.mxu0 0.0
    %668 = vmatpush1.msra.mxu0 0.0
    %669 = vmatprep.subr.mxu0 0.0
    %670 = vmatpush1.msra.mxu0 0.0
    %671 = vmatprep.subr.mxu0 0.0
    %672 = vmatpush1.msra.mxu0 0.0
    %673 = vmatprep.subr.mxu0 0.0
    %674 = vmatpush1.msra.mxu0 0.0
    %675 = vmatprep.subr.mxu0 0.0
    %676 = vmatpush1.msra.mxu0 0.0
    %677 = vmatprep.subr.mxu0 0.0
    %678 = vmatpush1.msra.mxu0 0.0
    %679 = vmatprep.subr.mxu0 0.0
    %680 = vmatpush1.msra.mxu0 0.0
    %681 = vmatprep.mubr.f32.mxu0 0.0
    %682 = vmatmul.mubr.f32.gmra.mrb[0].mxu0 %v443
    %v683 = vpop.f32.mrb[0].mxu0
    %v684 = vadd.f32 %v613, %v683
    %v685 = vpop.f32.mrb[0].mxu0
    %v686 = vadd.f32 %v615, %v685
    %687 = vdwg.mxu0
    %688 = vmatprep.subr.mxu0 %v25
    %689 = vmatpush1.msra.mxu0 %v24
    %690 = vmatprep.subr.mxu0 %v30
    %691 = vmatpush1.msra.mxu0 %v29
    %692 = vmatprep.subr.mxu0 %v35
    %693 = vmatpush1.msra.mxu0 %v34
    %694 = vmatprep.subr.mxu0 %v40
    %695 = vmatpush1.msra.mxu0 %v39
    %696 = vmatprep.subr.mxu0 %v45
    %697 = vmatpush1.msra.mxu0 %v44
    %698 = vmatprep.subr.mxu0 %v50
    %699 = vmatpush1.msra.mxu0 %v49
    %700 = vmatprep.subr.mxu0 %v55
    %701 = vmatpush1.msra.mxu0 %v54
    %702 = vmatprep.subr.mxu0 %v60
    %703 = vmatpush1.msra.mxu0 %v59
    %704 = vmatprep.subr.mxu0 %v65
    %705 = vmatpush1.msra.mxu0 %v64
    %706 = vmatprep.subr.mxu0 %v70
    %707 = vmatpush1.msra.mxu0 %v69
    %708 = vmatprep.subr.mxu0 %v75
    %709 = vmatpush1.msra.mxu0 %v74
    %710 = vmatprep.subr.mxu0 %v80
    %711 = vmatpush1.msra.mxu0 %v79
    %712 = vmatprep.subr.mxu0 %v85
    %713 = vmatpush1.msra.mxu0 %v84
    %714 = vmatprep.subr.mxu0 %v90
    %715 = vmatpush1.msra.mxu0 %v89
    %716 = vmatprep.subr.mxu0 %v95
    %717 = vmatpush1.msra.mxu0 %v94
    %718 = vmatprep.subr.mxu0 %v100
    %719 = vmatpush1.msra.mxu0 %v99
    %720 = vmatprep.subr.mxu0 %v105
    %721 = vmatpush1.msra.mxu0 %v104
    %722 = vmatprep.subr.mxu0 %v110
    %723 = vmatpush1.msra.mxu0 %v109
    %724 = vmatprep.subr.mxu0 %v115
    %725 = vmatpush1.msra.mxu0 %v114
    %726 = vmatprep.subr.mxu0 %v120
    %727 = vmatpush1.msra.mxu0 %v119
    %728 = vmatprep.subr.mxu0 %v125
    %729 = vmatpush1.msra.mxu0 %v124
    %730 = vmatprep.subr.mxu0 %v130
    %731 = vmatpush1.msra.mxu0 %v129
    %732 = vmatprep.subr.mxu0 %v135
    %733 = vmatpush1.msra.mxu0 %v134
    %734 = vmatprep.subr.mxu0 %v140
    %735 = vmatpush1.msra.mxu0 %v139
    %736 = vmatprep.subr.mxu0 %v145
    %737 = vmatpush1.msra.mxu0 %v144
    %738 = vmatprep.subr.mxu0 %v150
    %739 = vmatpush1.msra.mxu0 %v149
    %740 = vmatprep.subr.mxu0 %v155
    %741 = vmatpush1.msra.mxu0 %v154
    %742 = vmatprep.subr.mxu0 %v160
    %743 = vmatpush1.msra.mxu0 %v159
    %744 = vmatprep.subr.mxu0 %v165
    %745 = vmatpush1.msra.mxu0 %v164
    %746 = vmatprep.subr.mxu0 %v170
    %747 = vmatpush1.msra.mxu0 %v169
    %748 = vmatprep.subr.mxu0 %v175
    %749 = vmatpush1.msra.mxu0 %v174
    %750 = vmatprep.subr.mxu0 %v180
    %751 = vmatpush1.msra.mxu0 %v179
    %752 = vmatprep.mubr.f32.mxu0 %v431
    %753 = vmatmul.mubr.f32.gmra.mrb[0].mxu0 %v427
    %v754 = vpop.f32.mrb[0].mxu0
    %v755 = vadd.f32 %v461, %v754
    %v756 = vpop.f32.mrb[0].mxu0
    %v757 = vadd.f32 %v465, %v756
    %758 = vdwg.mxu0
    %759 = vmatprep.subr.mxu0 %v185
    %760 = vmatpush1.msra.mxu0 %v184
    %761 = vmatprep.subr.mxu0 %v190
    %762 = vmatpush1.msra.mxu0 %v189
    %763 = vmatprep.subr.mxu0 %v195
    %764 = vmatpush1.msra.mxu0 %v194
    %765 = vmatprep.subr.mxu0 %v200
    %766 = vmatpush1.msra.mxu0 %v199
    %767 = vmatprep.subr.mxu0 %v205
    %768 = vmatpush1.msra.mxu0 %v204
    %769 = vmatprep.subr.mxu0 %v210
    %770 = vmatpush1.msra.mxu0 %v209
    %771 = vmatprep.subr.mxu0 %v215
    %772 = vmatpush1.msra.mxu0 %v214
    %773 = vmatprep.subr.mxu0 %v220
    %774 = vmatpush1.msra.mxu0 %v219
    %775 = vmatprep.subr.mxu0 %v225
    %776 = vmatpush1.msra.mxu0 %v224
    %777 = vmatprep.subr.mxu0 %v230
    %778 = vmatpush1.msra.mxu0 %v229
    %779 = vmatprep.subr.mxu0 %v235
    %780 = vmatpush1.msra.mxu0 %v234
    %781 = vmatprep.subr.mxu0 %v240
    %782 = vmatpush1.msra.mxu0 %v239
    %783 = vmatprep.subr.mxu0 %v245
    %784 = vmatpush1.msra.mxu0 %v244
    %785 = vmatprep.subr.mxu0 %v250
    %786 = vmatpush1.msra.mxu0 %v249
    %787 = vmatprep.subr.mxu0 %v255
    %788 = vmatpush1.msra.mxu0 %v254
    %789 = vmatprep.subr.mxu0 %v260
    %790 = vmatpush1.msra.mxu0 %v259
    %791 = vmatprep.subr.mxu0 %v265
    %792 = vmatpush1.msra.mxu0 %v264
    %793 = vmatprep.subr.mxu0 %v270
    %794 = vmatpush1.msra.mxu0 %v269
    %795 = vmatprep.subr.mxu0 %v275
    %796 = vmatpush1.msra.mxu0 %v274
    %797 = vmatprep.subr.mxu0 %v280
    %798 = vmatpush1.msra.mxu0 %v279
    %799 = vmatprep.subr.mxu0 %v285
    %800 = vmatpush1.msra.mxu0 %v284
    %801 = vmatprep.subr.mxu0 %v290
    %802 = vmatpush1.msra.mxu0 %v289
    %803 = vmatprep.subr.mxu0 %v295
    %804 = vmatpush1.msra.mxu0 %v294
    %805 = vmatprep.subr.mxu0 %v300
    %806 = vmatpush1.msra.mxu0 %v299
    %807 = vmatprep.subr.mxu0 %v305
    %808 = vmatpush1.msra.mxu0 %v304
    %809 = vmatprep.subr.mxu0 %v310
    %810 = vmatpush1.msra.mxu0 %v309
    %811 = vmatprep.subr.mxu0 %v315
    %812 = vmatpush1.msra.mxu0 %v314
    %813 = vmatprep.subr.mxu0 %v320
    %814 = vmatpush1.msra.mxu0 %v319
    %815 = vmatprep.subr.mxu0 %v325
    %816 = vmatpush1.msra.mxu0 %v324
    %817 = vmatprep.subr.mxu0 %v330
    %818 = vmatpush1.msra.mxu0 %v329
    %819 = vmatprep.subr.mxu0 %v335
    %820 = vmatpush1.msra.mxu0 %v334
    %821 = vmatprep.subr.mxu0 %v340
    %822 = vmatpush1.msra.mxu0 %v339
    %823 = vmatprep.mubr.f32.mxu0 %v439
    %824 = vmatmul.mubr.f32.gmra.mrb[0].mxu0 %v435
    %v825 = vpop.f32.mrb[0].mxu0
    %v826 = vadd.f32 %v755, %v825
    %v827 = vpop.f32.mrb[0].mxu0
    %v828 = vadd.f32 %v757, %v827
    %829 = vdwg.mxu0
    %830 = vmatprep.subr.mxu0 %v345
    %831 = vmatpush1.msra.mxu0 %v344
    %832 = vmatprep.subr.mxu0 %v350
    %833 = vmatpush1.msra.mxu0 %v349
    %834 = vmatprep.subr.mxu0 %v355
    %835 = vmatpush1.msra.mxu0 %v354
    %836 = vmatprep.subr.mxu0 %v360
    %837 = vmatpush1.msra.mxu0 %v359
    %838 = vmatprep.subr.mxu0 %v365
    %839 = vmatpush1.msra.mxu0 %v364
    %840 = vmatprep.subr.mxu0 %v370
    %841 = vmatpush1.msra.mxu0 %v369
    %842 = vmatprep.subr.mxu0 %v375
    %843 = vmatpush1.msra.mxu0 %v374
    %844 = vmatprep.subr.mxu0 %v380
    %845 = vmatpush1.msra.mxu0 %v379
    %846 = vmatprep.subr.mxu0 %v385
    %847 = vmatpush1.msra.mxu0 %v384
    %848 = vmatprep.subr.mxu0 %v390
    %849 = vmatpush1.msra.mxu0 %v389
    %850 = vmatprep.subr.mxu0 %v395
    %851 = vmatpush1.msra.mxu0 %v394
    %852 = vmatprep.subr.mxu0 %v400
    %853 = vmatpush1.msra.mxu0 %v399
    %854 = vmatprep.subr.mxu0 %v405
    %855 = vmatpush1.msra.mxu0 %v404
    %856 = vmatprep.subr.mxu0 %v410
    %857 = vmatpush1.msra.mxu0 %v409
    %858 = vmatprep.subr.mxu0 %v415
    %859 = vmatpush1.msra.mxu0 %v414
    %860 = vmatprep.subr.mxu0 %v420
    %861 = vmatpush1.msra.mxu0 %v419
    %862 = vmatprep.subr.mxu0 0.0
    %863 = vmatpush1.msra.mxu0 0.0
    %864 = vmatprep.subr.mxu0 0.0
    %865 = vmatpush1.msra.mxu0 0.0
    %866 = vmatprep.subr.mxu0 0.0
    %867 = vmatpush1.msra.mxu0 0.0
    %868 = vmatprep.subr.mxu0 0.0
    %869 = vmatpush1.msra.mxu0 0.0
    %870 = vmatprep.subr.mxu0 0.0
    %871 = vmatpush1.msra.mxu0 0.0
    %872 = vmatprep.subr.mxu0 0.0
    %873 = vmatpush1.msra.mxu0 0.0
    %874 = vmatprep.subr.mxu0 0.0
    %875 = vmatpush1.msra.mxu0 0.0
    %876 = vmatprep.subr.mxu0 0.0
    %877 = vmatpush1.msra.mxu0 0.0
    %878 = vmatprep.subr.mxu0 0.0
    %879 = vmatpush1.msra.mxu0 0.0
    %880 = vmatprep.subr.mxu0 0.0
    %881 = vmatpush1.msra.mxu0 0.0
    %882 = vmatprep.subr.mxu0 0.0
    %883 = vmatpush1.msra.mxu0 0.0
    %884 = vmatprep.subr.mxu0 0.0
    %885 = vmatpush1.msra.mxu0 0.0
    %886 = vmatprep.subr.mxu0 0.0
    %887 = vmatpush1.msra.mxu0 0.0
    %888 = vmatprep.subr.mxu0 0.0
    %889 = vmatpush1.msra.mxu0 0.0
    %890 = vmatprep.subr.mxu0 0.0
    %891 = vmatpush1.msra.mxu0 0.0
    %892 = vmatprep.subr.mxu0 0.0
    %893 = vmatpush1.msra.mxu0 0.0
    %894 = vmatprep.mubr.f32.mxu0 0.0
    %895 = vmatmul.mubr.f32.gmra.mrb[0].mxu0 %v443
    %v896 = vpop.f32.mrb[0].mxu0
    %v897 = vadd.f32 %v826, %v896
    %v898 = vpop.f32.mrb[0].mxu0
    %v899 = vadd.f32 %v828, %v898
    %900 = vdwg.mxu0
    %901 = vmatprep.subr.mxu0 0.0
    %902 = vmatpush1.msra.mxu0 %v26
    %903 = vmatprep.subr.mxu0 0.0
    %904 = vmatpush1.msra.mxu0 %v31
    %905 = vmatprep.subr.mxu0 0.0
    %906 = vmatpush1.msra.mxu0 %v36
    %907 = vmatprep.subr.mxu0 0.0
    %908 = vmatpush1.msra.mxu0 %v41
    %909 = vmatprep.subr.mxu0 0.0
    %910 = vmatpush1.msra.mxu0 %v46
    %911 = vmatprep.subr.mxu0 0.0
    %912 = vmatpush1.msra.mxu0 %v51
    %913 = vmatprep.subr.mxu0 0.0
    %914 = vmatpush1.msra.mxu0 %v56
    %915 = vmatprep.subr.mxu0 0.0
    %916 = vmatpush1.msra.mxu0 %v61
    %917 = vmatprep.subr.mxu0 0.0
    %918 = vmatpush1.msra.mxu0 %v66
    %919 = vmatprep.subr.mxu0 0.0
    %920 = vmatpush1.msra.mxu0 %v71
    %921 = vmatprep.subr.mxu0 0.0
    %922 = vmatpush1.msra.mxu0 %v76
    %923 = vmatprep.subr.mxu0 0.0
    %924 = vmatpush1.msra.mxu0 %v81
    %925 = vmatprep.subr.mxu0 0.0
    %926 = vmatpush1.msra.mxu0 %v86
    %927 = vmatprep.subr.mxu0 0.0
    %928 = vmatpush1.msra.mxu0 %v91
    %929 = vmatprep.subr.mxu0 0.0
    %930 = vmatpush1.msra.mxu0 %v96
    %931 = vmatprep.subr.mxu0 0.0
    %932 = vmatpush1.msra.mxu0 %v101
    %933 = vmatprep.subr.mxu0 0.0
    %934 = vmatpush1.msra.mxu0 %v106
    %935 = vmatprep.subr.mxu0 0.0
    %936 = vmatpush1.msra.mxu0 %v111
    %937 = vmatprep.subr.mxu0 0.0
    %938 = vmatpush1.msra.mxu0 %v116
    %939 = vmatprep.subr.mxu0 0.0
    %940 = vmatpush1.msra.mxu0 %v121
    %941 = vmatprep.subr.mxu0 0.0
    %942 = vmatpush1.msra.mxu0 %v126
    %943 = vmatprep.subr.mxu0 0.0
    %944 = vmatpush1.msra.mxu0 %v131
    %945 = vmatprep.subr.mxu0 0.0
    %946 = vmatpush1.msra.mxu0 %v136
    %947 = vmatprep.subr.mxu0 0.0
    %948 = vmatpush1.msra.mxu0 %v141
    %949 = vmatprep.subr.mxu0 0.0
    %950 = vmatpush1.msra.mxu0 %v146
    %951 = vmatprep.subr.mxu0 0.0
    %952 = vmatpush1.msra.mxu0 %v151
    %953 = vmatprep.subr.mxu0 0.0
    %954 = vmatpush1.msra.mxu0 %v156
    %955 = vmatprep.subr.mxu0 0.0
    %956 = vmatpush1.msra.mxu0 %v161
    %957 = vmatprep.subr.mxu0 0.0
    %958 = vmatpush1.msra.mxu0 %v166
    %959 = vmatprep.subr.mxu0 0.0
    %960 = vmatpush1.msra.mxu0 %v171
    %961 = vmatprep.subr.mxu0 0.0
    %962 = vmatpush1.msra.mxu0 %v176
    %963 = vmatprep.subr.mxu0 0.0
    %964 = vmatpush1.msra.mxu0 %v181
    %965 = vmatprep.mubr.f32.mxu0 %v431
    %966 = vmatmul.mubr.f32.gmra.mrb[0].mxu0 %v427
    %v967 = vpop.f32.mrb[0].mxu0
    %v968 = vadd.f32 %v469, %v967
    %v969 = vpop.f32.mrb[0].mxu0
    %970 = vdwg.mxu0
    %971 = vmatprep.subr.mxu0 0.0
    %972 = vmatpush1.msra.mxu0 %v186
    %973 = vmatprep.subr.mxu0 0.0
    %974 = vmatpush1.msra.mxu0 %v191
    %975 = vmatprep.subr.mxu0 0.0
    %976 = vmatpush1.msra.mxu0 %v196
    %977 = vmatprep.subr.mxu0 0.0
    %978 = vmatpush1.msra.mxu0 %v201
    %979 = vmatprep.subr.mxu0 0.0
    %980 = vmatpush1.msra.mxu0 %v206
    %981 = vmatprep.subr.mxu0 0.0
    %982 = vmatpush1.msra.mxu0 %v211
    %983 = vmatprep.subr.mxu0 0.0
    %984 = vmatpush1.msra.mxu0 %v216
    %985 = vmatprep.subr.mxu0 0.0
    %986 = vmatpush1.msra.mxu0 %v221
    %987 = vmatprep.subr.mxu0 0.0
    %988 = vmatpush1.msra.mxu0 %v226
    %989 = vmatprep.subr.mxu0 0.0
    %990 = vmatpush1.msra.mxu0 %v231
    %991 = vmatprep.subr.mxu0 0.0
    %992 = vmatpush1.msra.mxu0 %v236
    %993 = vmatprep.subr.mxu0 0.0
    %994 = vmatpush1.msra.mxu0 %v241
    %995 = vmatprep.subr.mxu0 0.0
    %996 = vmatpush1.msra.mxu0 %v246
    %997 = vmatprep.subr.mxu0 0.0
    %998 = vmatpush1.msra.mxu0 %v251
    %999 = vmatprep.subr.mxu0 0.0
    %1000 = vmatpush1.msra.mxu0 %v256
    %1001 = vmatprep.subr.mxu0 0.0
    %1002 = vmatpush1.msra.mxu0 %v261
    %1003 = vmatprep.subr.mxu0 0.0
    %1004 = vmatpush1.msra.mxu0 %v266
    %1005 = vmatprep.subr.mxu0 0.0
    %1006 = vmatpush1.msra.mxu0 %v271
    %1007 = vmatprep.subr.mxu0 0.0
    %1008 = vmatpush1.msra.mxu0 %v276
    %1009 = vmatprep.subr.mxu0 0.0
    %1010 = vmatpush1.msra.mxu0 %v281
    %1011 = vmatprep.subr.mxu0 0.0
    %1012 = vmatpush1.msra.mxu0 %v286
    %1013 = vmatprep.subr.mxu0 0.0
    %1014 = vmatpush1.msra.mxu0 %v291
    %1015 = vmatprep.subr.mxu0 0.0
    %1016 = vmatpush1.msra.mxu0 %v296
    %1017 = vmatprep.subr.mxu0 0.0
    %1018 = vmatpush1.msra.mxu0 %v301
    %1019 = vmatprep.subr.mxu0 0.0
    %1020 = vmatpush1.msra.mxu0 %v306
    %1021 = vmatprep.subr.mxu0 0.0
    %1022 = vmatpush1.msra.mxu0 %v311
    %1023 = vmatprep.subr.mxu0 0.0
    %1024 = vmatpush1.msra.mxu0 %v316
    %1025 = vmatprep.subr.mxu0 0.0
    %1026 = vmatpush1.msra.mxu0 %v321
    %1027 = vmatprep.subr.mxu0 0.0
    %1028 = vmatpush1.msra.mxu0 %v326
    %1029 = vmatprep.subr.mxu0 0.0
    %1030 = vmatpush1.msra.mxu0 %v331
    %1031 = vmatprep.subr.mxu0 0.0
    %1032 = vmatpush1.msra.mxu0 %v336
    %1033 = vmatprep.subr.mxu0 0.0
    %1034 = vmatpush1.msra.mxu0 %v341
    %1035 = vmatprep.mubr.f32.mxu0 %v439
    %1036 = vmatmul.mubr.f32.gmra.mrb[0].mxu0 %v435
    %v1037 = vpop.f32.mrb[0].mxu0
    %v1038 = vadd.f32 %v968, %v1037
    %v1039 = vpop.f32.mrb[0].mxu0
    %1040 = vdwg.mxu0
    %1041 = vmatprep.subr.mxu0 0.0
    %1042 = vmatpush1.msra.mxu0 %v346
    %1043 = vmatprep.subr.mxu0 0.0
    %1044 = vmatpush1.msra.mxu0 %v351
    %1045 = vmatprep.subr.mxu0 0.0
    %1046 = vmatpush1.msra.mxu0 %v356
    %1047 = vmatprep.subr.mxu0 0.0
    %1048 = vmatpush1.msra.mxu0 %v361
    %1049 = vmatprep.subr.mxu0 0.0
    %1050 = vmatpush1.msra.mxu0 %v366
    %1051 = vmatprep.subr.mxu0 0.0
    %1052 = vmatpush1.msra.mxu0 %v371
    %1053 = vmatprep.subr.mxu0 0.0
    %1054 = vmatpush1.msra.mxu0 %v376
    %1055 = vmatprep.subr.mxu0 0.0
    %1056 = vmatpush1.msra.mxu0 %v381
    %1057 = vmatprep.subr.mxu0 0.0
    %1058 = vmatpush1.msra.mxu0 %v386
    %1059 = vmatprep.subr.mxu0 0.0
    %1060 = vmatpush1.msra.mxu0 %v391
    %1061 = vmatprep.subr.mxu0 0.0
    %1062 = vmatpush1.msra.mxu0 %v396
    %1063 = vmatprep.subr.mxu0 0.0
    %1064 = vmatpush1.msra.mxu0 %v401
    %1065 = vmatprep.subr.mxu0 0.0
    %1066 = vmatpush1.msra.mxu0 %v406
    %1067 = vmatprep.subr.mxu0 0.0
    %1068 = vmatpush1.msra.mxu0 %v411
    %1069 = vmatprep.subr.mxu0 0.0
    %1070 = vmatpush1.msra.mxu0 %v416
    %1071 = vmatprep.subr.mxu0 0.0
    %1072 = vmatpush1.msra.mxu0 %v421
    %1073 = vmatprep.subr.mxu0 0.0
    %1074 = vmatpush1.msra.mxu0 0.0
    %1075 = vmatprep.subr.mxu0 0.0
    %1076 = vmatpush1.msra.mxu0 0.0
    %1077 = vmatprep.subr.mxu0 0.0
    %1078 = vmatpush1.msra.mxu0 0.0
    %1079 = vmatprep.subr.mxu0 0.0
    %1080 = vmatpush1.msra.mxu0 0.0
    %1081 = vmatprep.subr.mxu0 0.0
    %1082 = vmatpush1.msra.mxu0 0.0
    %1083 = vmatprep.subr.mxu0 0.0
    %1084 = vmatpush1.msra.mxu0 0.0
    %1085 = vmatprep.subr.mxu0 0.0
    %1086 = vmatpush1.msra.mxu0 0.0
    %1087 = vmatprep.subr.mxu0 0.0
    %1088 = vmatpush1.msra.mxu0 0.0
    %1089 = vmatprep.subr.mxu0 0.0
    %1090 = vmatpush1.msra.mxu0 0.0
    %1091 = vmatprep.subr.mxu0 0.0
    %1092 = vmatpush1.msra.mxu0 0.0
    %1093 = vmatprep.subr.mxu0 0.0
    %1094 = vmatpush1.msra.mxu0 0.0
    %1095 = vmatprep.subr.mxu0 0.0
    %1096 = vmatpush1.msra.mxu0 0.0
    %1097 = vmatprep.subr.mxu0 0.0
    %1098 = vmatpush1.msra.mxu0 0.0
    %1099 = vmatprep.subr.mxu0 0.0
    %1100 = vmatpush1.msra.mxu0 0.0
    %1101 = vmatprep.subr.mxu0 0.0
    %1102 = vmatpush1.msra.mxu0 0.0
    %1103 = vmatprep.subr.mxu0 0.0
    %1104 = vmatpush1.msra.mxu0 0.0
    %1105 = vmatprep.mubr.f32.mxu0 0.0
    %1106 = vmatmul.mubr.f32.gmra.mrb[0].mxu0 %v443
    %v1107 = vpop.f32.mrb[0].mxu0
    %v1108 = vadd.f32 %v1038, %v1107
    %v1109 = vpop.f32.mrb[0].mxu0
    %1110 = vdwg.mxu0
    %v1111 = vmax.f32 %v684, 0.0
    %v1112 = vmax.f32 %v686, 0.0
    %v1113 = vmax.f32 %v897, 0.0
    %v1114 = vmax.f32 %v899, 0.0
    %v1115 = vmax.f32 %v1108, 0.0
    %v1116 = vld [vmem:[%s3] sm:$0xff]
    %v1117 = vld [vmem:[%s3 + $0x8] sm:$0xff]
    %v1118 = vld [vmem:[%s3 + $0x10] sm:$0xff]
    %v1119 = vld [vmem:[%s3 + $0x18] sm:$0xff]
    %v1120 = vld [vmem:[%s3 + $0x20] sm:$0xff]
    %v1121 = vld [vmem:[%s3 + $0x28] sm:$0xff]
    %v1122 = vld [vmem:[%s3 + $0x30] sm:$0xff]
    %v1123 = vld [vmem:[%s3 + $0x38] sm:$0xff]
    %v1124 = vld [vmem:[%s3 + $0x40] sm:$0xff]
    %v1125 = vld [vmem:[%s3 + $0x48] sm:$0xff]
    %v1126 = vld [vmem:[%s3 + $0x50] sm:$0xff]
    %v1127 = vld [vmem:[%s3 + $0x58] sm:$0xff]
    %v1128 = vld [vmem:[%s3 + $0x60] sm:$0xff]
    %v1129 = vld [vmem:[%s3 + $0x68] sm:$0xff]
    %v1130 = vld [vmem:[%s3 + $0x70] sm:$0xff]
    %v1131 = vld [vmem:[%s3 + $0x78] sm:$0xff]
    %v1132 = vld [vmem:[%s3 + $0x80] sm:$0xff]
    %v1133 = vld [vmem:[%s3 + $0x88] sm:$0xff]
    %v1134 = vld [vmem:[%s3 + $0x90] sm:$0xff]
    %v1135 = vld [vmem:[%s3 + $0x98] sm:$0xff]
    %v1136 = vld [vmem:[%s3 + $0xa0] sm:$0xff]
    %v1137 = vld [vmem:[%s3 + $0xa8] sm:$0xff]
    %v1138 = vld [vmem:[%s3 + $0xb0] sm:$0xff]
    %v1139 = vld [vmem:[%s3 + $0xb8] sm:$0xff]
    %v1140 = vld [vmem:[%s3 + $0xc0] sm:$0xff]
    %v1141 = vld [vmem:[%s3 + $0xc8] sm:$0xff]
    %v1142 = vld [vmem:[%s3 + $0xd0] sm:$0xff]
    %v1143 = vld [vmem:[%s3 + $0xd8] sm:$0xff]
    %v1144 = vld [vmem:[%s3 + $0xe0] sm:$0xff]
    %v1145 = vld [vmem:[%s3 + $0xe8] sm:$0xff]
    %v1146 = vld [vmem:[%s3 + $0xf0] sm:$0xff]
    %v1147 = vld [vmem:[%s3 + $0xf8] sm:$0xff]
    %v1148 = vld [vmem:[%s3 + $0x100] sm:$0xff]
    %v1149 = vld [vmem:[%s3 + $0x108] sm:$0xff]
    %v1150 = vld [vmem:[%s3 + $0x110] sm:$0xff]
    %v1151 = vld [vmem:[%s3 + $0x118] sm:$0xff]
    %v1152 = vld [vmem:[%s3 + $0x120] sm:$0xff]
    %v1153 = vld [vmem:[%s3 + $0x128] sm:$0xff]
    %v1154 = vld [vmem:[%s3 + $0x130] sm:$0xff]
    %v1155 = vld [vmem:[%s3 + $0x138] sm:$0xff]
    %v1156 = vld [vmem:[%s3 + $0x140] sm:$0xff]
    %v1157 = vld [vmem:[%s3 + $0x148] sm:$0xff]
    %v1158 = vld [vmem:[%s3 + $0x150] sm:$0xff]
    %v1159 = vld [vmem:[%s3 + $0x158] sm:$0xff]
    %v1160 = vld [vmem:[%s3 + $0x160] sm:$0xff]
    %v1161 = vld [vmem:[%s3 + $0x168] sm:$0xff]
    %v1162 = vld [vmem:[%s3 + $0x170] sm:$0xff]
    %v1163 = vld [vmem:[%s3 + $0x178] sm:$0xff]
    %v1164 = vld [vmem:[%s3 + $0x180] sm:$0xff]
    %v1165 = vld [vmem:[%s3 + $0x188] sm:$0xff]
    %v1166 = vld [vmem:[%s3 + $0x190] sm:$0xff]
    %v1167 = vld [vmem:[%s3 + $0x198] sm:$0xff]
    %v1168 = vld [vmem:[%s3 + $0x1a0] sm:$0xff]
    %v1169 = vld [vmem:[%s3 + $0x1a8] sm:$0xff]
    %v1170 = vld [vmem:[%s3 + $0x1b0] sm:$0xff]
    %v1171 = vld [vmem:[%s3 + $0x1b8] sm:$0xff]
    %v1172 = vld [vmem:[%s3 + $0x1c0] sm:$0xff]
    %v1173 = vld [vmem:[%s3 + $0x1c8] sm:$0xff]
    %v1174 = vld [vmem:[%s3 + $0x1d0] sm:$0xff]
    %v1175 = vld [vmem:[%s3 + $0x1d8] sm:$0xff]
    %v1176 = vld [vmem:[%s3 + $0x1e0] sm:$0xff]
    %v1177 = vld [vmem:[%s3 + $0x1e8] sm:$0xff]
    %v1178 = vld [vmem:[%s3 + $0x1f0] sm:$0xff]
    %v1179 = vld [vmem:[%s3 + $0x1f8] sm:$0xff]
    %v1180 = vld [vmem:[%s3 + $0x200] sm:$0xff]
    %v1181 = vld [vmem:[%s3 + $0x208] sm:$0xff]
    %v1182 = vld [vmem:[%s3 + $0x210] sm:$0xff]
    %v1183 = vld [vmem:[%s3 + $0x218] sm:$0xff]
    %v1184 = vld [vmem:[%s3 + $0x220] sm:$0xff]
    %v1185 = vld [vmem:[%s3 + $0x228] sm:$0xff]
    %v1186 = vld [vmem:[%s3 + $0x230] sm:$0xff]
    %v1187 = vld [vmem:[%s3 + $0x238] sm:$0xff]
    %v1188 = vld [vmem:[%s3 + $0x240] sm:$0xff]
    %v1189 = vld [vmem:[%s3 + $0x248] sm:$0xff]
    %v1190 = vld [vmem:[%s3 + $0x250] sm:$0xff]
    %v1191 = vld [vmem:[%s3 + $0x258] sm:$0xff]
    %v1192 = vld [vmem:[%s3 + $0x260] sm:$0xff]
    %v1193 = vld [vmem:[%s3 + $0x268] sm:$0xff]
    %v1194 = vld [vmem:[%s3 + $0x270] sm:$0xff]
    %v1195 = vld [vmem:[%s3 + $0x278] sm:$0xff]
    %v1196 = vld [vmem:[%s3 + $0x280] sm:$0xff]
    %v1197 = vld [vmem:[%s3 + $0x288] sm:$0xff]
    %v1198 = vld [vmem:[%s3 + $0x290] sm:$0xff]
    %v1199 = vld [vmem:[%s3 + $0x298] sm:$0xff]
    %v1200 = vld [vmem:[%s3 + $0x2a0] sm:$0xff]
    %v1201 = vld [vmem:[%s3 + $0x2a8] sm:$0xff]
    %v1202 = vld [vmem:[%s3 + $0x2b0] sm:$0xff]
    %v1203 = vld [vmem:[%s3 + $0x2b8] sm:$0xff]
    %v1204 = vld [vmem:[%s3 + $0x2c0] sm:$0xff]
    %v1205 = vld [vmem:[%s3 + $0x2c8] sm:$0xff]
    %v1206 = vld [vmem:[%s3 + $0x2d0] sm:$0xff]
    %v1207 = vld [vmem:[%s3 + $0x2d8] sm:$0xff]
    %v1208 = vld [vmem:[%s3 + $0x2e0] sm:$0xff]
    %v1209 = vld [vmem:[%s3 + $0x2e8] sm:$0xff]
    %v1210 = vld [vmem:[%s3 + $0x2f0] sm:$0xff]
    %v1211 = vld [vmem:[%s3 + $0x2f8] sm:$0xff]
    %v1212 = vld [vmem:[%s3 + $0x300] sm:$0xff]
    %v1213 = vld [vmem:[%s3 + $0x308] sm:$0xff]
    %v1214 = vld [vmem:[%s3 + $0x310] sm:$0xff]
    %v1215 = vld [vmem:[%s3 + $0x318] sm:$0xff]
    %v1216 = vld [vmem:[%s3 + $0x320] sm:$0xff]
    %v1217 = vld [vmem:[%s3 + $0x328] sm:$0xff]
    %v1218 = vld [vmem:[%s3 + $0x330] sm:$0xff]
    %v1219 = vld [vmem:[%s3 + $0x338] sm:$0xff]
    %v1220 = vld [vmem:[%s3 + $0x340] sm:$0xff]
    %v1221 = vld [vmem:[%s3 + $0x348] sm:$0xff]
    %v1222 = vld [vmem:[%s3 + $0x350] sm:$0xff]
    %v1223 = vld [vmem:[%s3 + $0x358] sm:$0xff]
    %v1224 = vld [vmem:[%s3 + $0x360] sm:$0xff]
    %v1225 = vld [vmem:[%s3 + $0x368] sm:$0xff]
    %v1226 = vld [vmem:[%s3 + $0x370] sm:$0xff]
    %v1227 = vld [vmem:[%s3 + $0x378] sm:$0xff]
    %v1228 = vld [vmem:[%s3 + $0x380] sm:$0xff]
    %v1229 = vld [vmem:[%s3 + $0x388] sm:$0xff]
    %v1230 = vld [vmem:[%s3 + $0x390] sm:$0xff]
    %v1231 = vld [vmem:[%s3 + $0x398] sm:$0xff]
    %v1232 = vld [vmem:[%s3 + $0x3a0] sm:$0xff]
    %v1233 = vld [vmem:[%s3 + $0x3a8] sm:$0xff]
    %v1234 = vld [vmem:[%s3 + $0x3b0] sm:$0xff]
    %v1235 = vld [vmem:[%s3 + $0x3b8] sm:$0xff]
    %v1236 = vld [vmem:[%s3 + $0x3c0] sm:$0xff]
    %v1237 = vld [vmem:[%s3 + $0x3c8] sm:$0xff]
    %v1238 = vld [vmem:[%s3 + $0x3d0] sm:$0xff]
    %v1239 = vld [vmem:[%s3 + $0x3d8] sm:$0xff]
    %v1240 = vld [vmem:[%s3 + $0x3e0] sm:$0xff]
    %v1241 = vld [vmem:[%s3 + $0x3e8] sm:$0xff]
    %v1242 = vld [vmem:[%s3 + $0x3f0] sm:$0xff]
    %v1243 = vld [vmem:[%s3 + $0x3f8] sm:$0xff]
    %v1244 = vld [vmem:[%s3 + $0x400] sm:$0xff]
    %v1245 = vld [vmem:[%s3 + $0x408] sm:$0xff]
    %v1246 = vld [vmem:[%s3 + $0x410] sm:$0xff]
    %v1247 = vld [vmem:[%s3 + $0x418] sm:$0xff]
    %v1248 = vld [vmem:[%s3 + $0x420] sm:$0xff]
    %v1249 = vld [vmem:[%s3 + $0x428] sm:$0xff]
    %v1250 = vld [vmem:[%s3 + $0x430] sm:$0xff]
    %v1251 = vld [vmem:[%s3 + $0x438] sm:$0xff]
    %v1252 = vld [vmem:[%s3 + $0x440] sm:$0xff]
    %v1253 = vld [vmem:[%s3 + $0x448] sm:$0xff]
    %v1254 = vld [vmem:[%s3 + $0x450] sm:$0xff]
    %v1255 = vld [vmem:[%s3 + $0x458] sm:$0xff]
    %v1256 = vld [vmem:[%s3 + $0x460] sm:$0xff]
    %v1257 = vld [vmem:[%s3 + $0x468] sm:$0xff]
    %v1258 = vld [vmem:[%s3 + $0x470] sm:$0xff]
    %v1259 = vld [vmem:[%s3 + $0x478] sm:$0xff]
    %v1260 = vld [vmem:[%s3 + $0x480] sm:$0xff]
    %v1261 = vld [vmem:[%s3 + $0x488] sm:$0xff]
    %v1262 = vld [vmem:[%s3 + $0x490] sm:$0xff]
    %v1263 = vld [vmem:[%s3 + $0x498] sm:$0xff]
    %v1264 = vld [vmem:[%s3 + $0x4a0] sm:$0xff]
    %v1265 = vld [vmem:[%s3 + $0x4a8] sm:$0xff]
    %v1266 = vld [vmem:[%s3 + $0x4b0] sm:$0xff]
    %v1267 = vld [vmem:[%s3 + $0x4b8] sm:$0xff]
    %v1268 = vld [vmem:[%s3 + $0x4c0] sm:$0xff]
    %v1269 = vld [vmem:[%s3 + $0x4c8] sm:$0xff]
    %v1270 = vld [vmem:[%s3 + $0x4d0] sm:$0xff]
    %v1271 = vld [vmem:[%s3 + $0x4d8] sm:$0xff]
    %v1272 = vld [vmem:[%s3 + $0x4e0] sm:$0xff]
    %v1273 = vld [vmem:[%s3 + $0x4e8] sm:$0xff]
    %v1274 = vld [vmem:[%s3 + $0x4f0] sm:$0xff]
    %v1275 = vld [vmem:[%s3 + $0x4f8] sm:$0xff]
    %v1276 = vld [vmem:[%s3 + $0x500] sm:$0xff]
    %v1277 = vld [vmem:[%s3 + $0x508] sm:$0xff]
    %v1278 = vld [vmem:[%s3 + $0x510] sm:$0xff]
    %v1279 = vld [vmem:[%s3 + $0x518] sm:$0xff]
    %v1280 = vld [vmem:[%s3 + $0x520] sm:$0xff]
    %v1281 = vld [vmem:[%s3 + $0x528] sm:$0xff]
    %v1282 = vld [vmem:[%s3 + $0x530] sm:$0xff]
    %v1283 = vld [vmem:[%s3 + $0x538] sm:$0xff]
    %v1284 = vld [vmem:[%s3 + $0x540] sm:$0xff]
    %v1285 = vld [vmem:[%s3 + $0x548] sm:$0xff]
    %v1286 = vld [vmem:[%s3 + $0x550] sm:$0xff]
    %v1287 = vld [vmem:[%s3 + $0x558] sm:$0xff]
    %v1288 = vld [vmem:[%s3 + $0x560] sm:$0xff]
    %v1289 = vld [vmem:[%s3 + $0x568] sm:$0xff]
    %v1290 = vld [vmem:[%s3 + $0x570] sm:$0xff]
    %v1291 = vld [vmem:[%s3 + $0x578] sm:$0xff]
    %v1292 = vld [vmem:[%s3 + $0x580] sm:$0xff]
    %v1293 = vld [vmem:[%s3 + $0x588] sm:$0xff]
    %v1294 = vld [vmem:[%s3 + $0x590] sm:$0xff]
    %v1295 = vld [vmem:[%s3 + $0x598] sm:$0xff]
    %v1296 = vld [vmem:[%s3 + $0x5a0] sm:$0xff]
    %v1297 = vld [vmem:[%s3 + $0x5a8] sm:$0xff]
    %v1298 = vld [vmem:[%s3 + $0x5b0] sm:$0xff]
    %v1299 = vld [vmem:[%s3 + $0x5b8] sm:$0xff]
    %v1300 = vld [vmem:[%s3 + $0x5c0] sm:$0xff]
    %v1301 = vld [vmem:[%s3 + $0x5c8] sm:$0xff]
    %v1302 = vld [vmem:[%s3 + $0x5d0] sm:$0xff]
    %v1303 = vld [vmem:[%s3 + $0x5d8] sm:$0xff]
    %v1304 = vld [vmem:[%s3 + $0x5e0] sm:$0xff]
    %v1305 = vld [vmem:[%s3 + $0x5e8] sm:$0xff]
    %v1306 = vld [vmem:[%s3 + $0x5f0] sm:$0xff]
    %v1307 = vld [vmem:[%s3 + $0x5f8] sm:$0xff]
    %v1308 = vld [vmem:[%s3 + $0x600] sm:$0xff]
    %v1309 = vld [vmem:[%s3 + $0x608] sm:$0xff]
    %v1310 = vld [vmem:[%s3 + $0x610] sm:$0xff]
    %v1311 = vld [vmem:[%s3 + $0x618] sm:$0xff]
    %v1312 = vld [vmem:[%s3 + $0x620] sm:$0xff]
    %v1313 = vld [vmem:[%s3 + $0x628] sm:$0xff]
    %v1314 = vld [vmem:[%s3 + $0x630] sm:$0xff]
    %v1315 = vld [vmem:[%s3 + $0x638] sm:$0xff]
    %v1316 = vld [vmem:[%s3 + $0x640] sm:$0xff]
    %v1317 = vld [vmem:[%s3 + $0x648] sm:$0xff]
    %v1318 = vld [vmem:[%s3 + $0x650] sm:$0xff]
    %v1319 = vld [vmem:[%s3 + $0x658] sm:$0xff]
    %v1320 = vld [vmem:[%s3 + $0x660] sm:$0xff]
    %v1321 = vld [vmem:[%s3 + $0x668] sm:$0xff]
    %v1322 = vld [vmem:[%s3 + $0x670] sm:$0xff]
    %v1323 = vld [vmem:[%s3 + $0x678] sm:$0xff]
    %v1324 = vld [vmem:[%s3 + $0x680] sm:$0xff]
    %v1325 = vld [vmem:[%s3 + $0x688] sm:$0xff]
    %v1326 = vld [vmem:[%s3 + $0x690] sm:$0xff]
    %v1327 = vld [vmem:[%s3 + $0x698] sm:$0xff]
    %v1328 = vld [vmem:[%s3 + $0x6a0] sm:$0xff]
    %v1329 = vld [vmem:[%s3 + $0x6a8] sm:$0xff]
    %v1330 = vld [vmem:[%s3 + $0x6b0] sm:$0xff]
    %v1331 = vld [vmem:[%s3 + $0x6b8] sm:$0xff]
    %v1332 = vld [vmem:[%s3 + $0x6c0] sm:$0xff]
    %v1333 = vld [vmem:[%s3 + $0x6c8] sm:$0xff]
    %v1334 = vld [vmem:[%s3 + $0x6d0] sm:$0xff]
    %v1335 = vld [vmem:[%s3 + $0x6d8] sm:$0xff]
    %v1336 = vld [vmem:[%s3 + $0x6e0] sm:$0xff]
    %v1337 = vld [vmem:[%s3 + $0x6e8] sm:$0xff]
    %v1338 = vld [vmem:[%s3 + $0x6f0] sm:$0xff]
    %v1339 = vld [vmem:[%s3 + $0x6f8] sm:$0xff]
    %v1340 = vld [vmem:[%s3 + $0x700] sm:$0xff]
    %v1341 = vld [vmem:[%s3 + $0x708] sm:$0xff]
    %v1342 = vld [vmem:[%s3 + $0x710] sm:$0xff]
    %v1343 = vld [vmem:[%s3 + $0x718] sm:$0xff]
    %v1344 = vld [vmem:[%s3 + $0x720] sm:$0xff]
    %v1345 = vld [vmem:[%s3 + $0x728] sm:$0xff]
    %v1346 = vld [vmem:[%s3 + $0x730] sm:$0xff]
    %v1347 = vld [vmem:[%s3 + $0x738] sm:$0xff]
    %v1348 = vld [vmem:[%s3 + $0x740] sm:$0xff]
    %v1349 = vld [vmem:[%s3 + $0x748] sm:$0xff]
    %v1350 = vld [vmem:[%s3 + $0x750] sm:$0xff]
    %v1351 = vld [vmem:[%s3 + $0x758] sm:$0xff]
    %v1352 = vld [vmem:[%s3 + $0x760] sm:$0xff]
    %v1353 = vld [vmem:[%s3 + $0x768] sm:$0xff]
    %v1354 = vld [vmem:[%s3 + $0x770] sm:$0xff]
    %v1355 = vld [vmem:[%s3 + $0x778] sm:$0xff]
    %v1356 = vld [vmem:[%s4] sm:$0x7]
    %v1358 = vlaneseq
    %v1359 = vshrl.u32 %v1358, 7
    %v1360 = vsub.s32 0, %v1359
    %v1361 = vrot.slane %v1356, %v1360
    %v1362 = vlaneseq
    %v1363 = vshrl.u32 %v1362, 7
    %v1364 = vsub.s32 1, %v1363
    %v1365 = vrot.slane %v1356, %v1364
    %v1366 = vlaneseq
    %v1367 = vshrl.u32 %v1366, 7
    %v1368 = vsub.s32 2, %v1367
    %v1369 = vrot.slane %v1356, %v1368
    %1373 = vmatprep.subr.mxu0 %v1117
    %1374 = vmatpush1.msra.mxu0 %v1116
    %1375 = vmatprep.subr.mxu0 %v1120
    %1376 = vmatpush1.msra.mxu0 %v1119
    %1377 = vmatprep.subr.mxu0 %v1123
    %1378 = vmatpush1.msra.mxu0 %v1122
    %1379 = vmatprep.subr.mxu0 %v1126
    %1380 = vmatpush1.msra.mxu0 %v1125
    %1381 = vmatprep.subr.mxu0 %v1129
    %1382 = vmatpush1.msra.mxu0 %v1128
    %1383 = vmatprep.subr.mxu0 %v1132
    %1384 = vmatpush1.msra.mxu0 %v1131
    %1385 = vmatprep.subr.mxu0 %v1135
    %1386 = vmatpush1.msra.mxu0 %v1134
    %1387 = vmatprep.subr.mxu0 %v1138
    %1388 = vmatpush1.msra.mxu0 %v1137
    %1389 = vmatprep.subr.mxu0 %v1141
    %1390 = vmatpush1.msra.mxu0 %v1140
    %1391 = vmatprep.subr.mxu0 %v1144
    %1392 = vmatpush1.msra.mxu0 %v1143
    %1393 = vmatprep.subr.mxu0 %v1147
    %1394 = vmatpush1.msra.mxu0 %v1146
    %1395 = vmatprep.subr.mxu0 %v1150
    %1396 = vmatpush1.msra.mxu0 %v1149
    %1397 = vmatprep.subr.mxu0 %v1153
    %1398 = vmatpush1.msra.mxu0 %v1152
    %1399 = vmatprep.subr.mxu0 %v1156
    %1400 = vmatpush1.msra.mxu0 %v1155
    %1401 = vmatprep.subr.mxu0 %v1159
    %1402 = vmatpush1.msra.mxu0 %v1158
    %1403 = vmatprep.subr.mxu0 %v1162
    %1404 = vmatpush1.msra.mxu0 %v1161
    %1405 = vmatprep.subr.mxu0 %v1165
    %1406 = vmatpush1.msra.mxu0 %v1164
    %1407 = vmatprep.subr.mxu0 %v1168
    %1408 = vmatpush1.msra.mxu0 %v1167
    %1409 = vmatprep.subr.mxu0 %v1171
    %1410 = vmatpush1.msra.mxu0 %v1170
    %1411 = vmatprep.subr.mxu0 %v1174
    %1412 = vmatpush1.msra.mxu0 %v1173
    %1413 = vmatprep.subr.mxu0 %v1177
    %1414 = vmatpush1.msra.mxu0 %v1176
    %1415 = vmatprep.subr.mxu0 %v1180
    %1416 = vmatpush1.msra.mxu0 %v1179
    %1417 = vmatprep.subr.mxu0 %v1183
    %1418 = vmatpush1.msra.mxu0 %v1182
    %1419 = vmatprep.subr.mxu0 %v1186
    %1420 = vmatpush1.msra.mxu0 %v1185
    %1421 = vmatprep.subr.mxu0 %v1189
    %1422 = vmatpush1.msra.mxu0 %v1188
    %1423 = vmatprep.subr.mxu0 %v1192
    %1424 = vmatpush1.msra.mxu0 %v1191
    %1425 = vmatprep.subr.mxu0 %v1195
    %1426 = vmatpush1.msra.mxu0 %v1194
    %1427 = vmatprep.subr.mxu0 %v1198
    %1428 = vmatpush1.msra.mxu0 %v1197
    %1429 = vmatprep.subr.mxu0 %v1201
    %1430 = vmatpush1.msra.mxu0 %v1200
    %1431 = vmatprep.subr.mxu0 %v1204
    %1432 = vmatpush1.msra.mxu0 %v1203
    %1433 = vmatprep.subr.mxu0 %v1207
    %1434 = vmatpush1.msra.mxu0 %v1206
    %1435 = vmatprep.subr.mxu0 %v1210
    %1436 = vmatpush1.msra.mxu0 %v1209
    %1437 = vmatprep.mubr.f32.mxu0 %v1112
    %1438 = vmatmul.mubr.f32.gmra.mrb[0].mxu0 %v1111
    %v1439 = vpop.f32.mrb[0].mxu0
    %v1440 = vadd.f32 %v1361, %v1439
    %v1441 = vpop.f32.mrb[0].mxu0
    %v1442 = vadd.f32 %v1365, %v1441
    %1443 = vdwg.mxu0
    %1444 = vmatprep.subr.mxu0 %v1213
    %1445 = vmatpush1.msra.mxu0 %v1212
    %1446 = vmatprep.subr.mxu0 %v1216
    %1447 = vmatpush1.msra.mxu0 %v1215
    %1448 = vmatprep.subr.mxu0 %v1219
    %1449 = vmatpush1.msra.mxu0 %v1218
    %1450 = vmatprep.subr.mxu0 %v1222
    %1451 = vmatpush1.msra.mxu0 %v1221
    %1452 = vmatprep.subr.mxu0 %v1225
    %1453 = vmatpush1.msra.mxu0 %v1224
    %1454 = vmatprep.subr.mxu0 %v1228
    %1455 = vmatpush1.msra.mxu0 %v1227
    %1456 = vmatprep.subr.mxu0 %v1231
    %1457 = vmatpush1.msra.mxu0 %v1230
    %1458 = vmatprep.subr.mxu0 %v1234
    %1459 = vmatpush1.msra.mxu0 %v1233
    %1460 = vmatprep.subr.mxu0 %v1237
    %1461 = vmatpush1.msra.mxu0 %v1236
    %1462 = vmatprep.subr.mxu0 %v1240
    %1463 = vmatpush1.msra.mxu0 %v1239
    %1464 = vmatprep.subr.mxu0 %v1243
    %1465 = vmatpush1.msra.mxu0 %v1242
    %1466 = vmatprep.subr.mxu0 %v1246
    %1467 = vmatpush1.msra.mxu0 %v1245
    %1468 = vmatprep.subr.mxu0 %v1249
    %1469 = vmatpush1.msra.mxu0 %v1248
    %1470 = vmatprep.subr.mxu0 %v1252
    %1471 = vmatpush1.msra.mxu0 %v1251
    %1472 = vmatprep.subr.mxu0 %v1255
    %1473 = vmatpush1.msra.mxu0 %v1254
    %1474 = vmatprep.subr.mxu0 %v1258
    %1475 = vmatpush1.msra.mxu0 %v1257
    %1476 = vmatprep.subr.mxu0 %v1261
    %1477 = vmatpush1.msra.mxu0 %v1260
    %1478 = vmatprep.subr.mxu0 %v1264
    %1479 = vmatpush1.msra.mxu0 %v1263
    %1480 = vmatprep.subr.mxu0 %v1267
    %1481 = vmatpush1.msra.mxu0 %v1266
    %1482 = vmatprep.subr.mxu0 %v1270
    %1483 = vmatpush1.msra.mxu0 %v1269
    %1484 = vmatprep.subr.mxu0 %v1273
    %1485 = vmatpush1.msra.mxu0 %v1272
    %1486 = vmatprep.subr.mxu0 %v1276
    %1487 = vmatpush1.msra.mxu0 %v1275
    %1488 = vmatprep.subr.mxu0 %v1279
    %1489 = vmatpush1.msra.mxu0 %v1278
    %1490 = vmatprep.subr.mxu0 %v1282
    %1491 = vmatpush1.msra.mxu0 %v1281
    %1492 = vmatprep.subr.mxu0 %v1285
    %1493 = vmatpush1.msra.mxu0 %v1284
    %1494 = vmatprep.subr.mxu0 %v1288
    %1495 = vmatpush1.msra.mxu0 %v1287
    %1496 = vmatprep.subr.mxu0 %v1291
    %1497 = vmatpush1.msra.mxu0 %v1290
    %1498 = vmatprep.subr.mxu0 %v1294
    %1499 = vmatpush1.msra.mxu0 %v1293
    %1500 = vmatprep.subr.mxu0 %v1297
    %1501 = vmatpush1.msra.mxu0 %v1296
    %1502 = vmatprep.subr.mxu0 %v1300
    %1503 = vmatpush1.msra.mxu0 %v1299
    %1504 = vmatprep.subr.mxu0 %v1303
    %1505 = vmatpush1.msra.mxu0 %v1302
    %1506 = vmatprep.subr.mxu0 %v1306
    %1507 = vmatpush1.msra.mxu0 %v1305
    %1508 = vmatprep.mubr.f32.mxu0 %v1114
    %1509 = vmatmul.mubr.f32.gmra.mrb[0].mxu0 %v1113
    %v1510 = vpop.f32.mrb[0].mxu0
    %v1511 = vadd.f32 %v1440, %v1510
    %v1512 = vpop.f32.mrb[0].mxu0
    %v1513 = vadd.f32 %v1442, %v1512
    %1514 = vdwg.mxu0
    %1515 = vmatprep.subr.mxu0 %v1309
    %1516 = vmatpush1.msra.mxu0 %v1308
    %1517 = vmatprep.subr.mxu0 %v1312
    %1518 = vmatpush1.msra.mxu0 %v1311
    %1519 = vmatprep.subr.mxu0 %v1315
    %1520 = vmatpush1.msra.mxu0 %v1314
    %1521 = vmatprep.subr.mxu0 %v1318
    %1522 = vmatpush1.msra.mxu0 %v1317
    %1523 = vmatprep.subr.mxu0 %v1321
    %1524 = vmatpush1.msra.mxu0 %v1320
    %1525 = vmatprep.subr.mxu0 %v1324
    %1526 = vmatpush1.msra.mxu0 %v1323
    %1527 = vmatprep.subr.mxu0 %v1327
    %1528 = vmatpush1.msra.mxu0 %v1326
    %1529 = vmatprep.subr.mxu0 %v1330
    %1530 = vmatpush1.msra.mxu0 %v1329
    %1531 = vmatprep.subr.mxu0 %v1333
    %1532 = vmatpush1.msra.mxu0 %v1332
    %1533 = vmatprep.subr.mxu0 %v1336
    %1534 = vmatpush1.msra.mxu0 %v1335
    %1535 = vmatprep.subr.mxu0 %v1339
    %1536 = vmatpush1.msra.mxu0 %v1338
    %1537 = vmatprep.subr.mxu0 %v1342
    %1538 = vmatpush1.msra.mxu0 %v1341
    %1539 = vmatprep.subr.mxu0 %v1345
    %1540 = vmatpush1.msra.mxu0 %v1344
    %1541 = vmatprep.subr.mxu0 %v1348
    %1542 = vmatpush1.msra.mxu0 %v1347
    %1543 = vmatprep.subr.mxu0 %v1351
    %1544 = vmatpush1.msra.mxu0 %v1350
    %1545 = vmatprep.subr.mxu0 %v1354
    %1546 = vmatpush1.msra.mxu0 %v1353
    %1547 = vmatprep.subr.mxu0 0.0
    %1548 = vmatpush1.msra.mxu0 0.0
    %1549 = vmatprep.subr.mxu0 0.0
    %1550 = vmatpush1.msra.mxu0 0.0
    %1551 = vmatprep.subr.mxu0 0.0
    %1552 = vmatpush1.msra.mxu0 0.0
    %1553 = vmatprep.subr.mxu0 0.0
    %1554 = vmatpush1.msra.mxu0 0.0
    %1555 = vmatprep.subr.mxu0 0.0
    %1556 = vmatpush1.msra.mxu0 0.0
    %1557 = vmatprep.subr.mxu0 0.0
    %1558 = vmatpush1.msra.mxu0 0.0
    %1559 = vmatprep.subr.mxu0 0.0
    %1560 = vmatpush1.msra.mxu0 0.0
    %1561 = vmatprep.subr.mxu0 0.0
    %1562 = vmatpush1.msra.mxu0 0.0
    %1563 = vmatprep.subr.mxu0 0.0
    %1564 = vmatpush1.msra.mxu0 0.0
    %1565 = vmatprep.subr.mxu0 0.0
    %1566 = vmatpush1.msra.mxu0 0.0
    %1567 = vmatprep.subr.mxu0 0.0
    %1568 = vmatpush1.msra.mxu0 0.0
    %1569 = vmatprep.subr.mxu0 0.0
    %1570 = vmatpush1.msra.mxu0 0.0
    %1571 = vmatprep.subr.mxu0 0.0
    %1572 = vmatpush1.msra.mxu0 0.0
    %1573 = vmatprep.subr.mxu0 0.0
    %1574 = vmatpush1.msra.mxu0 0.0
    %1575 = vmatprep.subr.mxu0 0.0
    %1576 = vmatpush1.msra.mxu0 0.0
    %1577 = vmatprep.subr.mxu0 0.0
    %1578 = vmatpush1.msra.mxu0 0.0
    %1579 = vmatprep.mubr.f32.mxu0 0.0
    %1580 = vmatmul.mubr.f32.gmra.mrb[0].mxu0 %v1115
    %v1581 = vpop.f32.mrb[0].mxu0
    %v1582 = vadd.f32 %v1511, %v1581
    %v1583 = vpop.f32.mrb[0].mxu0
    %v1584 = vadd.f32 %v1513, %v1583
    %1585 = vdwg.mxu0
    %1586 = vmatprep.subr.mxu0 0.0
    %1587 = vmatpush1.msra.mxu0 %v1118
    %1588 = vmatprep.subr.mxu0 0.0
    %1589 = vmatpush1.msra.mxu0 %v1121
    %1590 = vmatprep.subr.mxu0 0.0
    %1591 = vmatpush1.msra.mxu0 %v1124
    %1592 = vmatprep.subr.mxu0 0.0
    %1593 = vmatpush1.msra.mxu0 %v1127
    %1594 = vmatprep.subr.mxu0 0.0
    %1595 = vmatpush1.msra.mxu0 %v1130
    %1596 = vmatprep.subr.mxu0 0.0
    %1597 = vmatpush1.msra.mxu0 %v1133
    %1598 = vmatprep.subr.mxu0 0.0
    %1599 = vmatpush1.msra.mxu0 %v1136
    %1600 = vmatprep.subr.mxu0 0.0
    %1601 = vmatpush1.msra.mxu0 %v1139
    %1602 = vmatprep.subr.mxu0 0.0
    %1603 = vmatpush1.msra.mxu0 %v1142
    %1604 = vmatprep.subr.mxu0 0.0
    %1605 = vmatpush1.msra.mxu0 %v1145
    %1606 = vmatprep.subr.mxu0 0.0
    %1607 = vmatpush1.msra.mxu0 %v1148
    %1608 = vmatprep.subr.mxu0 0.0
    %1609 = vmatpush1.msra.mxu0 %v1151
    %1610 = vmatprep.subr.mxu0 0.0
    %1611 = vmatpush1.msra.mxu0 %v1154
    %1612 = vmatprep.subr.mxu0 0.0
    %1613 = vmatpush1.msra.mxu0 %v1157
    %1614 = vmatprep.subr.mxu0 0.0
    %1615 = vmatpush1.msra.mxu0 %v1160
    %1616 = vmatprep.subr.mxu0 0.0
    %1617 = vmatpush1.msra.mxu0 %v1163
    %1618 = vmatprep.subr.mxu0 0.0
    %1619 = vmatpush1.msra.mxu0 %v1166
    %1620 = vmatprep.subr.mxu0 0.0
    %1621 = vmatpush1.msra.mxu0 %v1169
    %1622 = vmatprep.subr.mxu0 0.0
    %1623 = vmatpush1.msra.mxu0 %v1172
    %1624 = vmatprep.subr.mxu0 0.0
    %1625 = vmatpush1.msra.mxu0 %v1175
    %1626 = vmatprep.subr.mxu0 0.0
    %1627 = vmatpush1.msra.mxu0 %v1178
    %1628 = vmatprep.subr.mxu0 0.0
    %1629 = vmatpush1.msra.mxu0 %v1181
    %1630 = vmatprep.subr.mxu0 0.0
    %1631 = vmatpush1.msra.mxu0 %v1184
    %1632 = vmatprep.subr.mxu0 0.0
    %1633 = vmatpush1.msra.mxu0 %v1187
    %1634 = vmatprep.subr.mxu0 0.0
    %1635 = vmatpush1.msra.mxu0 %v1190
    %1636 = vmatprep.subr.mxu0 0.0
    %1637 = vmatpush1.msra.mxu0 %v1193
    %1638 = vmatprep.subr.mxu0 0.0
    %1639 = vmatpush1.msra.mxu0 %v1196
    %1640 = vmatprep.subr.mxu0 0.0
    %1641 = vmatpush1.msra.mxu0 %v1199
    %1642 = vmatprep.subr.mxu0 0.0
    %1643 = vmatpush1.msra.mxu0 %v1202
    %1644 = vmatprep.subr.mxu0 0.0
    %1645 = vmatpush1.msra.mxu0 %v1205
    %1646 = vmatprep.subr.mxu0 0.0
    %1647 = vmatpush1.msra.mxu0 %v1208
    %1648 = vmatprep.subr.mxu0 0.0
    %1649 = vmatpush1.msra.mxu0 %v1211
    %1650 = vmatprep.mubr.f32.mxu0 %v1112
    %1651 = vmatmul.mubr.f32.gmra.mrb[0].mxu0 %v1111
    %v1652 = vpop.f32.mrb[0].mxu0
    %v1653 = vadd.f32 %v1369, %v1652
    %v1654 = vpop.f32.mrb[0].mxu0
    %1655 = vdwg.mxu0
    %1656 = vmatprep.subr.mxu0 0.0
    %1657 = vmatpush1.msra.mxu0 %v1214
    %1658 = vmatprep.subr.mxu0 0.0
    %1659 = vmatpush1.msra.mxu0 %v1217
    %1660 = vmatprep.subr.mxu0 0.0
    %1661 = vmatpush1.msra.mxu0 %v1220
    %1662 = vmatprep.subr.mxu0 0.0
    %1663 = vmatpush1.msra.mxu0 %v1223
    %1664 = vmatprep.subr.mxu0 0.0
    %1665 = vmatpush1.msra.mxu0 %v1226
    %1666 = vmatprep.subr.mxu0 0.0
    %1667 = vmatpush1.msra.mxu0 %v1229
    %1668 = vmatprep.subr.mxu0 0.0
    %1669 = vmatpush1.msra.mxu0 %v1232
    %1670 = vmatprep.subr.mxu0 0.0
    %1671 = vmatpush1.msra.mxu0 %v1235
    %1672 = vmatprep.subr.mxu0 0.0
    %1673 = vmatpush1.msra.mxu0 %v1238
    %1674 = vmatprep.subr.mxu0 0.0
    %1675 = vmatpush1.msra.mxu0 %v1241
    %1676 = vmatprep.subr.mxu0 0.0
    %1677 = vmatpush1.msra.mxu0 %v1244
    %1678 = vmatprep.subr.mxu0 0.0
    %1679 = vmatpush1.msra.mxu0 %v1247
    %1680 = vmatprep.subr.mxu0 0.0
    %1681 = vmatpush1.msra.mxu0 %v1250
    %1682 = vmatprep.subr.mxu0 0.0
    %1683 = vmatpush1.msra.mxu0 %v1253
    %1684 = vmatprep.subr.mxu0 0.0
    %1685 = vmatpush1.msra.mxu0 %v1256
    %1686 = vmatprep.subr.mxu0 0.0
    %1687 = vmatpush1.msra.mxu0 %v1259
    %1688 = vmatprep.subr.mxu0 0.0
    %1689 = vmatpush1.msra.mxu0 %v1262
    %1690 = vmatprep.subr.mxu0 0.0
    %1691 = vmatpush1.msra.mxu0 %v1265
    %1692 = vmatprep.subr.mxu0 0.0
    %1693 = vmatpush1.msra.mxu0 %v1268
    %1694 = vmatprep.subr.mxu0 0.0
    %1695 = vmatpush1.msra.mxu0 %v1271
    %1696 = vmatprep.subr.mxu0 0.0
    %1697 = vmatpush1.msra.mxu0 %v1274
    %1698 = vmatprep.subr.mxu0 0.0
    %1699 = vmatpush1.msra.mxu0 %v1277
    %1700 = vmatprep.subr.mxu0 0.0
    %1701 = vmatpush1.msra.mxu0 %v1280
    %1702 = vmatprep.subr.mxu0 0.0
    %1703 = vmatpush1.msra.mxu0 %v1283
    %1704 = vmatprep.subr.mxu0 0.0
    %1705 = vmatpush1.msra.mxu0 %v1286
    %1706 = vmatprep.subr.mxu0 0.0
    %1707 = vmatpush1.msra.mxu0 %v1289
    %1708 = vmatprep.subr.mxu0 0.0
    %1709 = vmatpush1.msra.mxu0 %v1292
    %1710 = vmatprep.subr.mxu0 0.0
    %1711 = vmatpush1.msra.mxu0 %v1295
    %1712 = vmatprep.subr.mxu0 0.0
    %1713 = vmatpush1.msra.mxu0 %v1298
    %1714 = vmatprep.subr.mxu0 0.0
    %1715 = vmatpush1.msra.mxu0 %v1301
    %1716 = vmatprep.subr.mxu0 0.0
    %1717 = vmatpush1.msra.mxu0 %v1304
    %1718 = vmatprep.subr.mxu0 0.0
    %1719 = vmatpush1.msra.mxu0 %v1307
    %1720 = vmatprep.mubr.f32.mxu0 %v1114
    %1721 = vmatmul.mubr.f32.gmra.mrb[0].mxu0 %v1113
    %v1722 = vpop.f32.mrb[0].mxu0
    %v1723 = vadd.f32 %v1653, %v1722
    %v1724 = vpop.f32.mrb[0].mxu0
    %1725 = vdwg.mxu0
    %1726 = vmatprep.subr.mxu0 0.0
    %1727 = vmatpush1.msra.mxu0 %v1310
    %1728 = vmatprep.subr.mxu0 0.0
    %1729 = vmatpush1.msra.mxu0 %v1313
    %1730 = vmatprep.subr.mxu0 0.0
    %1731 = vmatpush1.msra.mxu0 %v1316
    %1732 = vmatprep.subr.mxu0 0.0
    %1733 = vmatpush1.msra.mxu0 %v1319
    %1734 = vmatprep.subr.mxu0 0.0
    %1735 = vmatpush1.msra.mxu0 %v1322
    %1736 = vmatprep.subr.mxu0 0.0
    %1737 = vmatpush1.msra.mxu0 %v1325
    %1738 = vmatprep.subr.mxu0 0.0
    %1739 = vmatpush1.msra.mxu0 %v1328
    %1740 = vmatprep.subr.mxu0 0.0
    %1741 = vmatpush1.msra.mxu0 %v1331
    %1742 = vmatprep.subr.mxu0 0.0
    %1743 = vmatpush1.msra.mxu0 %v1334
    %1744 = vmatprep.subr.mxu0 0.0
    %1745 = vmatpush1.msra.mxu0 %v1337
    %1746 = vmatprep.subr.mxu0 0.0
    %1747 = vmatpush1.msra.mxu0 %v1340
    %1748 = vmatprep.subr.mxu0 0.0
    %1749 = vmatpush1.msra.mxu0 %v1343
    %1750 = vmatprep.subr.mxu0 0.0
    %1751 = vmatpush1.msra.mxu0 %v1346
    %1752 = vmatprep.subr.mxu0 0.0
    %1753 = vmatpush1.msra.mxu0 %v1349
    %1754 = vmatprep.subr.mxu0 0.0
    %1755 = vmatpush1.msra.mxu0 %v1352
    %1756 = vmatprep.subr.mxu0 0.0
    %1757 = vmatpush1.msra.mxu0 %v1355
    %1758 = vmatprep.subr.mxu0 0.0
    %1759 = vmatpush1.msra.mxu0 0.0
    %1760 = vmatprep.subr.mxu0 0.0
    %1761 = vmatpush1.msra.mxu0 0.0
    %1762 = vmatprep.subr.mxu0 0.0
    %1763 = vmatpush1.msra.mxu0 0.0
    %1764 = vmatprep.subr.mxu0 0.0
    %1765 = vmatpush1.msra.mxu0 0.0
    %1766 = vmatprep.subr.mxu0 0.0
    %1767 = vmatpush1.msra.mxu0 0.0
    %1768 = vmatprep.subr.mxu0 0.0
    %1769 = vmatpush1.msra.mxu0 0.0
    %1770 = vmatprep.subr.mxu0 0.0
    %1771 = vmatpush1.msra.mxu0 0.0
    %1772 = vmatprep.subr.mxu0 0.0
    %1773 = vmatpush1.msra.mxu0 0.0
    %1774 = vmatprep.subr.mxu0 0.0
    %1775 = vmatpush1.msra.mxu0 0.0
    %1776 = vmatprep.subr.mxu0 0.0
    %1777 = vmatpush1.msra.mxu0 0.0
    %1778 = vmatprep.subr.mxu0 0.0
    %1779 = vmatpush1.msra.mxu0 0.0
    %1780 = vmatprep.subr.mxu0 0.0
    %1781 = vmatpush1.msra.mxu0 0.0
    %1782 = vmatprep.subr.mxu0 0.0
    %1783 = vmatpush1.msra.mxu0 0.0
    %1784 = vmatprep.subr.mxu0 0.0
    %1785 = vmatpush1.msra.mxu0 0.0
    %1786 = vmatprep.subr.mxu0 0.0
    %1787 = vmatpush1.msra.mxu0 0.0
    %1788 = vmatprep.subr.mxu0 0.0
    %1789 = vmatpush1.msra.mxu0 0.0
    %1790 = vmatprep.mubr.f32.mxu0 0.0
    %1791 = vmatmul.mubr.f32.gmra.mrb[0].mxu0 %v1115
    %v1792 = vpop.f32.mrb[0].mxu0
    %v1793 = vadd.f32 %v1723, %v1792
    %v1794 = vpop.f32.mrb[0].mxu0
    %1795 = vdwg.mxu0
    %v1799 = vcombine.low %v1582, %v1584
    %v1801 = vunpack.c.l.s4 1966171168
    %v1802 = vunpack.c.0.s8 %v1801
    %v1803 = vlaneseq
    %v1804 = vshrl.u32 %v1803, 7
    %v1805 = vsub.s32 %v1802, %v1804
    %v1806 = vrot.slane %v1799, %v1805
    %v1808 = vunpack.c.l.s4 1966171168
    %v1809 = vunpack.c.0.s8 %v1808
    %v1810 = vlaneseq
    %v1811 = vshrl.u32 %v1810, 7
    %v1812 = vsub.s32 %v1809, %v1811
    %v1813 = vrot.slane %v1793, %v1812
    %v1814 = vcombine.low %v1806, %v1813
    %v1816 = vunpack.c.l.s4 1966171168
    %v1817 = vunpack.c.0.s8 %v1816
    %v1818 = vlaneseq
    %v1819 = vshrl.u32 %v1818, 7
    %v1820 = vsub.s32 %v1817, %v1819
    %v1821 = vrot.slane %v1814, %v1820
    %v1823 = vlaneseq
    %vm1824 = vcmp.ge.s32.totalorder %v1823, 0
    %vm1825 = vcmp.lt.s32.totalorder %v1823, 320
    %vm1826 = vmand %vm1824, %vm1825
    %1827 = vst.msk [vmem:[#allocation2] sm:$0x7] %vm1826, %v1821
    // Predicated region
    $region22: #{tpu_custom_call.1} parent=1 // pred_check
      _
    $region23: #{tpu_custom_call.1} parent=1 // pred_check_branch
      %1829 = sbr.rel (0) target = $region25
    $region24: #{tpu_custom_call.1} parent=1 // pred_region
      %s1831 = ssub.s32 48, 48
      %1832 = vsyncadd [#allocation3], %s1831
      %s1834 = sshll.u32 [#allocation2], 4
      %s1835 = int_to_ptr.vmem [resolvable:$true] %s1834
      %1837 = dma.vmem_to_hbm [thread:$0]  %s1835, 48, %s5, [#allocation3]
    $region25: #{tpu_custom_call.1} parent=1 // pred_fallthru
      _
    // Predicated region
    $region26: #{tpu_custom_call.1} parent=1 // pred_check
      _
    $region27: #{tpu_custom_call.1} parent=1 // pred_check_branch
      %1839 = sbr.rel (0) target = $region29
    $region28: #{tpu_custom_call.1} parent=1 // pred_region
      %1840 = dma.done [#allocation3], 48
    $region29: #{tpu_custom_call.1} parent=1 // pred_fallthru
      _
    %1841 = vsyncpa [#allocation3], 1

</llo_original>
